<compile_context>
chip_gen: v5e
topology: v5e:2x2
jax: 0.10.0
libtpu: 0.0.40
codegen_flags: <defaults>
</compile_context>

<pallas_src>
import functools

import jax
import jax.numpy as jnp
from jax.experimental import pallas as pl
from jax.experimental.pallas import tpu as pltpu

STATE_DIM = 1536   # input_dim
HIDDEN_DIM = 512   # hidden_dim


def _predictor_kernel(x_ref, w1_ref, b1_ref, w2_ref, b2_ref, o_ref):
    # x_ref:  (TB, STATE_DIM)      VMEM  f32 (cast to compute dtype in-kernel)
    # w1_ref: (STATE_DIM, HIDDEN)  VMEM  resident (pre-transposed: [in, out])
    # b1_ref: (1, HIDDEN)          VMEM  f32
    # w2_ref: (HIDDEN, HIDDEN)     VMEM  resident
    # b2_ref: (1, HIDDEN)          VMEM  f32
    # o_ref:  (TB, HIDDEN)         VMEM
    cdt = w1_ref.dtype                              # MXU compute dtype = weight dtype
    x = x_ref[...].astype(cdt)                      # in-kernel cast: no extra HBM traffic
    h = jnp.dot(x, w1_ref[...], preferred_element_type=jnp.float32)
    h = jnp.maximum(h + b1_ref[...].astype(jnp.float32), 0.0)   # bias + ReLU in f32
    o = jnp.dot(h.astype(cdt), w2_ref[...], preferred_element_type=jnp.float32)
    o_ref[...] = (o + b2_ref[...].astype(jnp.float32)).astype(o_ref.dtype)


def _round_up(n, m):
    return ((n + m - 1) // m) * m


def predictor_net(x, w1_t, b1, w2_t, b2, *, tb=512, out_dtype=None):
    """Forward pass of PredictorNet.

    x:    [B, STATE_DIM] f32 (cast to the weight dtype inside the kernel)
    w1_t: [STATE_DIM, HIDDEN]  Linear1 weight pre-transposed to [in, out];
          its dtype selects the MXU path (bf16 = fast path, f32 = exact path).
          Convert weights ONCE at init -- not per call.
    b1:   [1, HIDDEN]
    w2_t: [HIDDEN, HIDDEN]
    b2:   [1, HIDDEN]
    out_dtype: output dtype (default: x.dtype). Use jnp.bfloat16 to halve the
          output stream if the downstream RND error computation tolerates it.
    """
    B, D = x.shape
    H = w1_t.shape[1]
    assert D == w1_t.shape[0] and w2_t.shape == (H, H)
    assert w1_t.dtype == w2_t.dtype
    out_dtype = x.dtype if out_dtype is None else out_dtype

    # Batch tile: big (default 512) to amortize the ~0.35us per-grid-step
    # overhead, never larger than the batch (rounded to 16 for sublane
    # packing), and capped so the grid has >= 2 steps when there is enough
    # work to shard the batch axis across v7x's two TensorCores.
    tb = max(16, min(tb, _round_up(B, 16)))
    if B >= 256:
        tb = min(tb, _round_up(pl.cdiv(B, 2), 16))
    grid = (pl.cdiv(B, tb),)   # ragged tail handled by Pallas' clipped DMAs (no jnp.pad)

    # Weights/biases are grid-invariant -> single-buffer them (saves ~2 MiB).
    resident = functools.partial(pl.BlockSpec, pipeline_mode=pl.Buffered(1))

    itemsize = lambda a: jnp.dtype(a.dtype).itemsize
    flops = 2 * B * (D * H + H * H)
    bytes_accessed = (
        x.size * itemsize(x)
        + w1_t.size * itemsize(w1_t)
        + w2_t.size * itemsize(w2_t)
        + b1.size * itemsize(b1)
        + b2.size * itemsize(b2)
        + B * H * jnp.dtype(out_dtype).itemsize
    )

    out = pl.pallas_call(
        _predictor_kernel,
        out_shape=jax.ShapeDtypeStruct((B, H), out_dtype),
        grid_spec=pltpu.PrefetchScalarGridSpec(
            num_scalar_prefetch=0,
            grid=grid,
            in_specs=[
                pl.BlockSpec((tb, D), lambda i: (i, 0)),   # x tile (double-buffered)
                resident((D, H), lambda i: (0, 0)),        # W1^T resident
                resident((1, H), lambda i: (0, 0)),        # b1
                resident((H, H), lambda i: (0, 0)),        # W2^T resident
                resident((1, H), lambda i: (0, 0)),        # b2
            ],
            out_specs=pl.BlockSpec((tb, H), lambda i: (i, 0)),
        ),
        compiler_params=pltpu.CompilerParams(
            # batch axis shards across TCs on v7x (grid kept >= 2 steps above)
            dimension_semantics=("parallel",),
            # ~18 MiB worst case at tb=1024 (f32 x double-buffered + resident
            # bf16 weights + f32 out); 32 MiB is safe on v5e/v6e/v7x.
            vmem_limit_bytes=32 * 1024 * 1024,
        ),
        cost_estimate=pl.CostEstimate(
            flops=flops, transcendentals=0, bytes_accessed=bytes_accessed
        ),
    )(x, w1_t, b1, w2_t, b2)

    return out


def _init_params(key, *, weight_dtype=jnp.bfloat16):
    """Deterministic synthetic init matching nn.Linear shapes.

    PyTorch shapes: W1 [512, 1536], b1 [512], W2 [512, 512], b2 [512].
    Weights are stored transposed ([in, out]) and converted to `weight_dtype`
    ONCE here (one-time cost, never on the per-call path); biases stay f32.
    """
    k1, k2, k3, k4 = jax.random.split(key, 4)
    bound1 = 1.0 / jnp.sqrt(STATE_DIM)
    bound2 = 1.0 / jnp.sqrt(HIDDEN_DIM)
    w1 = jax.random.uniform(k1, (HIDDEN_DIM, STATE_DIM), jnp.float32, -bound1, bound1)
    b1 = jax.random.uniform(k2, (HIDDEN_DIM,), jnp.float32, -bound1, bound1)
    w2 = jax.random.uniform(k3, (HIDDEN_DIM, HIDDEN_DIM), jnp.float32, -bound2, bound2)
    b2 = jax.random.uniform(k4, (HIDDEN_DIM,), jnp.float32, -bound2, bound2)
    return (
        w1.T.astype(weight_dtype),
        b1.reshape(1, HIDDEN_DIM),
        w2.T.astype(weight_dtype),
        b2.reshape(1, HIDDEN_DIM),
    )


def _reference(x, w1_t, b1, w2_t, b2):
    h = jnp.maximum(x @ w1_t + b1, 0.0)
    return h @ w2_t + b2


if __name__ == "__main__":
    key = jax.random.PRNGKey(0)
    kx, kx2, kp = jax.random.split(key, 3)

    # --- f32 exact path, small ragged batch (B=12, single partial tile) -----
    w1_f32, b1, w2_f32, b2 = _init_params(kp, weight_dtype=jnp.float32)

    B = 12
    x = jax.random.normal(kx, (B, STATE_DIM), jnp.float32)
    ref = _reference(x, w1_f32, b1, w2_f32, b2)

    out_f32 = jax.block_until_ready(predictor_net(x, w1_f32, b1, w2_f32, b2))
    assert out_f32.shape == (B, HIDDEN_DIM)
    assert jnp.allclose(out_f32, ref, atol=1e-4, rtol=1e-4), "f32 mismatch vs reference"

    # --- bf16 fast path: weights converted ONCE, x cast in-kernel ------------
    # Larger ragged batch -> exercises the >=2-step grid (v7x sharding) and
    # the clipped-DMA tail tile without any jnp.pad copy.
    w1_bf16 = w1_f32.astype(jnp.bfloat16)
    w2_bf16 = w2_f32.astype(jnp.bfloat16)

    B2 = 300
    x2 = jax.random.normal(kx2, (B2, STATE_DIM), jnp.float32)
    ref2 = _reference(x2, w1_f32, b1, w2_f32, b2)

    out_bf16 = jax.block_until_ready(predictor_net(x2, w1_bf16, b1, w2_bf16, b2))
    assert out_bf16.shape == (B2, HIDDEN_DIM)
    assert jnp.allclose(out_bf16, ref2, atol=5e-2, rtol=5e-2), "bf16 mismatch vs reference"

    # Small batch on the bf16 path too (single partial tile).
    out_bf16_small = jax.block_until_ready(predictor_net(x, w1_bf16, b1, w2_bf16, b2))
    assert out_bf16_small.shape == (B, HIDDEN_DIM)
    assert jnp.allclose(out_bf16_small, ref, atol=5e-2, rtol=5e-2), "bf16 small-batch mismatch"

    print("KERNEL_OK")
</pallas_src>

<mosaic_0001>
module attributes {stable_mosaic.version = 11 : i64} {
  func.func @_predictor_kernel(%arg0: i32, %arg1: memref<16x1536xf32, #tpu.memory_space<vmem>>, %arg2: memref<1536x512xf32, #tpu.memory_space<vmem>>, %arg3: memref<1x512xf32, #tpu.memory_space<vmem>>, %arg4: memref<512x512xf32, #tpu.memory_space<vmem>>, %arg5: memref<1x512xf32, #tpu.memory_space<vmem>>, %arg6: memref<16x512xf32, #tpu.memory_space<vmem>>) attributes {dimension_semantics = [#tpu.dimension_semantics<parallel>], iteration_bounds = array<i64: 1>, scalar_prefetch = 0 : i64, scratch_operands = 0 : i64, tpu.core_type = #tpu.core_type<tc>, window_params = [{transform_indices = @transform_0, window_bounds = array<i64: 16, 1536>}, {pipeline_mode = #tpu.pipeline_mode<synchronous>, transform_indices = @transform_1, window_bounds = array<i64: 1536, 512>}, {pipeline_mode = #tpu.pipeline_mode<synchronous>, transform_indices = @transform_2, window_bounds = array<i64: 1, 512>}, {pipeline_mode = #tpu.pipeline_mode<synchronous>, transform_indices = @transform_3, window_bounds = array<i64: 512, 512>}, {pipeline_mode = #tpu.pipeline_mode<synchronous>, transform_indices = @transform_4, window_bounds = array<i64: 1, 512>}, {transform_indices = @transform_5, window_bounds = array<i64: 16, 512>}]} {
    %c0 = arith.constant 0 : index
    %c0_0 = arith.constant 0 : index
    %0 = vector.load %arg1[%c0, %c0_0] : memref<16x1536xf32, #tpu.memory_space<vmem>>, vector<16x1536xf32>
    %c0_1 = arith.constant 0 : index
    %c0_2 = arith.constant 0 : index
    %1 = vector.load %arg2[%c0_1, %c0_2] : memref<1536x512xf32, #tpu.memory_space<vmem>>, vector<1536x512xf32>
    %cst = arith.constant dense<0.000000e+00> : vector<16x512xf32>
    %2 = tpu.matmul %0, %1, %cst {dimension_numbers = #tpu.dot_dimension_numbers<[1], [0], [0], [1], [0, 0, 1, 1], [], []>} : vector<16x1536xf32>, vector<1536x512xf32>, vector<16x512xf32> -> vector<16x512xf32>
    %c0_3 = arith.constant 0 : index
    %c0_4 = arith.constant 0 : index
    %3 = vector.load %arg3[%c0_3, %c0_4] : memref<1x512xf32, #tpu.memory_space<vmem>>, vector<1x512xf32>
    %4 = vector.broadcast %3 : vector<1x512xf32> to vector<16x512xf32>
    %5 = arith.addf %2, %4 : vector<16x512xf32>
    %cst_5 = arith.constant 0.000000e+00 : f32
    %6 = vector.broadcast %cst_5 : f32 to vector<16x512xf32>
    %7 = arith.maximumf %5, %6 : vector<16x512xf32>
    %c0_6 = arith.constant 0 : index
    %c0_7 = arith.constant 0 : index
    %8 = vector.load %arg4[%c0_6, %c0_7] : memref<512x512xf32, #tpu.memory_space<vmem>>, vector<512x512xf32>
    %cst_8 = arith.constant dense<0.000000e+00> : vector<16x512xf32>
    %9 = tpu.matmul %7, %8, %cst_8 {dimension_numbers = #tpu.dot_dimension_numbers<[1], [0], [0], [1], [0, 0, 1, 1], [], []>} : vector<16x512xf32>, vector<512x512xf32>, vector<16x512xf32> -> vector<16x512xf32>
    %c0_9 = arith.constant 0 : index
    %c0_10 = arith.constant 0 : index
    %10 = vector.load %arg5[%c0_9, %c0_10] : memref<1x512xf32, #tpu.memory_space<vmem>>, vector<1x512xf32>
    %11 = vector.broadcast %10 : vector<1x512xf32> to vector<16x512xf32>
    %12 = arith.addf %9, %11 : vector<16x512xf32>
    %c0_11 = arith.constant 0 : index
    %c0_12 = arith.constant 0 : index
    %13 = vector.load %arg6[%c0_11, %c0_12] : memref<16x512xf32, #tpu.memory_space<vmem>>, vector<16x512xf32>
    tpu.vector_store %arg6[%c0_11, %c0_12], %12 {strides = array<i32>} : memref<16x512xf32, #tpu.memory_space<vmem>>, vector<16x512xf32>,
    return
  }
  func.func @transform_0(%arg0: i32) -> (i32, i32) {
    %c0_i32 = arith.constant 0 : i32
    %c0_i32_0 = arith.constant 0 : i32
    return %arg0, %c0_i32 : i32, i32
  }
  func.func @transform_1(%arg0: i32) -> (i32, i32) {
    %c0_i32 = arith.constant 0 : i32
    %c0_i32_0 = arith.constant 0 : i32
    %c0_i32_1 = arith.constant 0 : i32
    return %c0_i32, %c0_i32_0 : i32, i32
  }
  func.func @transform_2(%arg0: i32) -> (i32, i32) {
    %c0_i32 = arith.constant 0 : i32
    %c0_i32_0 = arith.constant 0 : i32
    %c0_i32_1 = arith.constant 0 : i32
    return %c0_i32, %c0_i32_0 : i32, i32
  }
  func.func @transform_3(%arg0: i32) -> (i32, i32) {
    %c0_i32 = arith.constant 0 : i32
    %c0_i32_0 = arith.constant 0 : i32
    %c0_i32_1 = arith.constant 0 : i32
    return %c0_i32, %c0_i32_0 : i32, i32
  }
  func.func @transform_4(%arg0: i32) -> (i32, i32) {
    %c0_i32 = arith.constant 0 : i32
    %c0_i32_0 = arith.constant 0 : i32
    %c0_i32_1 = arith.constant 0 : i32
    return %c0_i32, %c0_i32_0 : i32, i32
  }
  func.func @transform_5(%arg0: i32) -> (i32, i32) {
    %c0_i32 = arith.constant 0 : i32
    %c0_i32_0 = arith.constant 0 : i32
    return %arg0, %c0_i32 : i32, i32
  }
}

</mosaic_0001>

<llo_original>
// kernel: tpu_custom_call.1
$region0: #{tpu_custom_call.1}
  #allocation0 [shape = 'u32[]', space=smem, size = 0x4, offset = 0x4, fixed_abs, tag = 'smem constant byte address 0x4 - core index']
  #allocation1 [shape = 'u32[72,128]{1,0:T(1,128)}', space=vmem, size = 0x9000, scoped, tag = 'internal scratch']
  %s0 = inlined_call_operand.hbm [shape: f32[12,1536], index: 0, kind: input, shape index: {}]
  %s1 = inlined_call_operand.hbm [shape: f32[1536,512], index: 1, kind: input, shape index: {}]
  %s2 = inlined_call_operand.hbm [shape: f32[1,512], index: 2, kind: input, shape index: {}]
  %s3 = inlined_call_operand.hbm [shape: f32[512,512], index: 3, kind: input, shape index: {}]
  %s4 = inlined_call_operand.hbm [shape: f32[1,512], index: 4, kind: input, shape index: {}]
  %s5 = inlined_call_operand.hbm [shape: f32[12,512], index: 5, kind: output, shape index: {}]
  %s6 = sld [smem:[#allocation0]]
  $region50: #{tpu_custom_call.1} parent=0
    _
  %s8 = ssub.s32 1, %s6
  %s9 = scalar_select 0, %s8, %s6
  $region1: #{tpu_custom_call.1} parent=0
    #allocation2 [shape = 'u8[98304]{0}', space=vmem, size = 0x18000, scoped, tag = 'input window, operand 0, single buffered']
    #allocation3 [shape = 's32[1]{0}', space=sflag, size = 0x4, scoped, tag = 'scoped memory for tpu_custom_call.1']
    #allocation4 [shape = 's32[1]{0}', space=sflag, size = 0x4, scoped, tag = 'scoped memory for tpu_custom_call.1']
    #allocation5 [shape = 'u8[3145728]{0}', space=vmem, size = 0x300000, scoped, tag = 'input window, operand 1, single buffered']
    #allocation6 [shape = 's32[1]{0}', space=sflag, size = 0x4, scoped, tag = 'scoped memory for tpu_custom_call.1']
    #allocation7 [shape = 'u8[2048]{0}', space=vmem, size = 0x800, scoped, tag = 'input window, operand 2, single buffered']
    #allocation8 [shape = 'u8[1048576]{0}', space=vmem, size = 0x100000, scoped, tag = 'input window, operand 3, single buffered']
    #allocation9 [shape = 's32[1]{0}', space=sflag, size = 0x4, scoped, tag = 'scoped memory for tpu_custom_call.1']
    #allocation10 [shape = 'u8[2048]{0}', space=vmem, size = 0x800, scoped, tag = 'input window, operand 4, single buffered']
    #allocation11 [shape = 'u8[32768]{0}', space=vmem, size = 0x8000, scoped, tag = 'output window, operand 0, single buffered']
    %10 = vsyncpa [#allocation3], 0
    %11 = vsyncpa [#allocation6], 0
    %12 = vsyncpa [#allocation9], 0
    %13 = vsyncpa [#allocation4], 0
    // Predicated region
    $region2: #{tpu_custom_call.1} parent=1 // pred_check
      _
    $region3: #{tpu_custom_call.1} parent=1 // pred_check_branch
      %15 = sbr.rel (0) target = $region5
    $region4: #{tpu_custom_call.1} parent=1 // pred_region
      %17 = vsyncadd [#allocation3], 0
      %s18 = sshll.u32 %s0, 4
      %s19 = int_to_ptr.hbm [resolvable:$true] %s18
      %s20 = sshll.u32 [#allocation2], 4
      %s21 = int_to_ptr.vmem [resolvable:$true] %s20
      %26 = dma.hbm_to_vmem [thread:$0]  %s19, 3072, %s21, [#allocation3], 1536, 1536, 96
    $region5: #{tpu_custom_call.1} parent=1 // pred_fallthru
      _
    // Predicated region
    $region6: #{tpu_custom_call.1} parent=1 // pred_check
      _
    $region7: #{tpu_custom_call.1} parent=1 // pred_check_branch
      %28 = sbr.rel (0) target = $region9
    $region8: #{tpu_custom_call.1} parent=1 // pred_region
      %30 = vsyncadd [#allocation6], 0
      %s31 = sshll.u32 %s1, 4
      %s32 = int_to_ptr.hbm [resolvable:$true] %s31
      %s33 = sshll.u32 [#allocation5], 4
      %s34 = int_to_ptr.vmem [resolvable:$true] %s33
      %39 = dma.hbm_to_vmem [thread:$0]  %s32, 98304, %s34, [#allocation6], 512, 512, 32
    $region9: #{tpu_custom_call.1} parent=1 // pred_fallthru
      _
    // Predicated region
    $region10: #{tpu_custom_call.1} parent=1 // pred_check
      _
    $region11: #{tpu_custom_call.1} parent=1 // pred_check_branch
      %41 = sbr.rel (0) target = $region13
    $region12: #{tpu_custom_call.1} parent=1 // pred_region
      %43 = vsyncadd [#allocation6], 0
      %s45 = sshll.u32 %s2, 4
      %s46 = int_to_ptr.hbm [resolvable:$true] %s45
      %s47 = sshll.u32 [#allocation7], 4
      %s48 = int_to_ptr.vmem [resolvable:$true] %s47
      %50 = dma.hbm_to_vmem [thread:$0]  %s46, 64, %s48, [#allocation6]
    $region13: #{tpu_custom_call.1} parent=1 // pred_fallthru
      _
    // Predicated region
    $region14: #{tpu_custom_call.1} parent=1 // pred_check
      _
    $region15: #{tpu_custom_call.1} parent=1 // pred_check_branch
      %52 = sbr.rel (0) target = $region17
    $region16: #{tpu_custom_call.1} parent=1 // pred_region
      %54 = vsyncadd [#allocation9], 0
      %s55 = sshll.u32 %s3, 4
      %s56 = int_to_ptr.hbm [resolvable:$true] %s55
      %s57 = sshll.u32 [#allocation8], 4
      %s58 = int_to_ptr.vmem [resolvable:$true] %s57
      %63 = dma.hbm_to_vmem [thread:$0]  %s56, 32768, %s58, [#allocation9], 512, 512, 32
    $region17: #{tpu_custom_call.1} parent=1 // pred_fallthru
      _
    // Predicated region
    $region18: #{tpu_custom_call.1} parent=1 // pred_check
      _
    $region19: #{tpu_custom_call.1} parent=1 // pred_check_branch
      %65 = sbr.rel (0) target = $region21
    $region20: #{tpu_custom_call.1} parent=1 // pred_region
      %67 = vsyncadd [#allocation9], 0
      %s69 = sshll.u32 %s4, 4
      %s70 = int_to_ptr.hbm [resolvable:$true] %s69
      %s71 = sshll.u32 [#allocation10], 4
      %s72 = int_to_ptr.vmem [resolvable:$true] %s71
      %74 = dma.hbm_to_vmem [thread:$0]  %s70, 64, %s72, [#allocation9]
    $region21: #{tpu_custom_call.1} parent=1 // pred_fallthru
      _
    // Predicated region
    $region22: #{tpu_custom_call.1} parent=1 // pred_check
      _
    $region23: #{tpu_custom_call.1} parent=1 // pred_check_branch
      %76 = sbr.rel (0) target = $region25
    $region24: #{tpu_custom_call.1} parent=1 // pred_region
      %78 = dma.done [#allocation3], 3072
    $region25: #{tpu_custom_call.1} parent=1 // pred_fallthru
      _
    // Predicated region
    $region26: #{tpu_custom_call.1} parent=1 // pred_check
      _
    $region27: #{tpu_custom_call.1} parent=1 // pred_check_branch
      %80 = sbr.rel (0) target = $region29
    $region28: #{tpu_custom_call.1} parent=1 // pred_region
      %82 = dma.done [#allocation6], 98304
    $region29: #{tpu_custom_call.1} parent=1 // pred_fallthru
      _
    // Predicated region
    $region30: #{tpu_custom_call.1} parent=1 // pred_check
      _
    $region31: #{tpu_custom_call.1} parent=1 // pred_check_branch
      %84 = sbr.rel (0) target = $region33
    $region32: #{tpu_custom_call.1} parent=1 // pred_region
      %86 = dma.done [#allocation6], 64
    $region33: #{tpu_custom_call.1} parent=1 // pred_fallthru
      _
    // Predicated region
    $region34: #{tpu_custom_call.1} parent=1 // pred_check
      _
    $region35: #{tpu_custom_call.1} parent=1 // pred_check_branch
      %88 = sbr.rel (0) target = $region37
    $region36: #{tpu_custom_call.1} parent=1 // pred_region
      %90 = dma.done [#allocation9], 32768
    $region37: #{tpu_custom_call.1} parent=1 // pred_fallthru
      _
    // Predicated region
    $region38: #{tpu_custom_call.1} parent=1 // pred_check
      _
    $region39: #{tpu_custom_call.1} parent=1 // pred_check_branch
      %92 = sbr.rel (0) target = $region41
    $region40: #{tpu_custom_call.1} parent=1 // pred_region
      %94 = dma.done [#allocation9], 64
    $region41: #{tpu_custom_call.1} parent=1 // pred_fallthru
      _
    %v95 = vld [vmem:[#allocation2] sm:$0xff]
    %v96 = vld [vmem:[#allocation2 + $0x8] sm:$0xff]
    %v97 = vld [vmem:[#allocation2 + $0x10] sm:$0xff]
    %v98 = vld [vmem:[#allocation2 + $0x18] sm:$0xff]
    %v99 = vld [vmem:[#allocation2 + $0x20] sm:$0xff]
    %v100 = vld [vmem:[#allocation2 + $0x28] sm:$0xff]
    %v101 = vld [vmem:[#allocation2 + $0x30] sm:$0xff]
    %v102 = vld [vmem:[#allocation2 + $0x38] sm:$0xff]
    %v103 = vld [vmem:[#allocation2 + $0x40] sm:$0xff]
    %v104 = vld [vmem:[#allocation2 + $0x48] sm:$0xff]
    %v105 = vld [vmem:[#allocation2 + $0x50] sm:$0xff]
    %v106 = vld [vmem:[#allocation2 + $0x58] sm:$0xff]
    %v107 = vld [vmem:[#allocation2 + $0x60] sm:$0xff]
    %v108 = vld [vmem:[#allocation2 + $0x68] sm:$0xff]
    %v109 = vld [vmem:[#allocation2 + $0x70] sm:$0xff]
    %v110 = vld [vmem:[#allocation2 + $0x78] sm:$0xff]
    %v111 = vld [vmem:[#allocation2 + $0x80] sm:$0xff]
    %v112 = vld [vmem:[#allocation2 + $0x88] sm:$0xff]
    %v113 = vld [vmem:[#allocation2 + $0x90] sm:$0xff]
    %v114 = vld [vmem:[#allocation2 + $0x98] sm:$0xff]
    %v115 = vld [vmem:[#allocation2 + $0xa0] sm:$0xff]
    %v116 = vld [vmem:[#allocation2 + $0xa8] sm:$0xff]
    %v117 = vld [vmem:[#allocation2 + $0xb0] sm:$0xff]
    %v118 = vld [vmem:[#allocation2 + $0xb8] sm:$0xff]
    %v119 = vld [vmem:[#allocation5] sm:$0xff]
    %v120 = vld [vmem:[#allocation5 + $0x8] sm:$0xff]
    %v121 = vld [vmem:[#allocation5 + $0x10] sm:$0xff]
    %v122 = vld [vmem:[#allocation5 + $0x18] sm:$0xff]
    %v123 = vld [vmem:[#allocation5 + $0x20] sm:$0xff]
    %v124 = vld [vmem:[#allocation5 + $0x28] sm:$0xff]
    %v125 = vld [vmem:[#allocation5 + $0x30] sm:$0xff]
    %v126 = vld [vmem:[#allocation5 + $0x38] sm:$0xff]
    %v127 = vld [vmem:[#allocation5 + $0x40] sm:$0xff]
    %v128 = vld [vmem:[#allocation5 + $0x48] sm:$0xff]
    %v129 = vld [vmem:[#allocation5 + $0x50] sm:$0xff]
    %v130 = vld [vmem:[#allocation5 + $0x58] sm:$0xff]
    %v131 = vld [vmem:[#allocation5 + $0x60] sm:$0xff]
    %v132 = vld [vmem:[#allocation5 + $0x68] sm:$0xff]
    %v133 = vld [vmem:[#allocation5 + $0x70] sm:$0xff]
    %v134 = vld [vmem:[#allocation5 + $0x78] sm:$0xff]
    %v135 = vld [vmem:[#allocation5 + $0x80] sm:$0xff]
    %v136 = vld [vmem:[#allocation5 + $0x88] sm:$0xff]
    %v137 = vld [vmem:[#allocation5 + $0x90] sm:$0xff]
    %v138 = vld [vmem:[#allocation5 + $0x98] sm:$0xff]
    %v139 = vld [vmem:[#allocation5 + $0xa0] sm:$0xff]
    %v140 = vld [vmem:[#allocation5 + $0xa8] sm:$0xff]
    %v141 = vld [vmem:[#allocation5 + $0xb0] sm:$0xff]
    %v142 = vld [vmem:[#allocation5 + $0xb8] sm:$0xff]
    %v143 = vld [vmem:[#allocation5 + $0xc0] sm:$0xff]
    %v144 = vld [vmem:[#allocation5 + $0xc8] sm:$0xff]
    %v145 = vld [vmem:[#allocation5 + $0xd0] sm:$0xff]
    %v146 = vld [vmem:[#allocation5 + $0xd8] sm:$0xff]
    %v147 = vld [vmem:[#allocation5 + $0xe0] sm:$0xff]
    %v148 = vld [vmem:[#allocation5 + $0xe8] sm:$0xff]
    %v149 = vld [vmem:[#allocation5 + $0xf0] sm:$0xff]
    %v150 = vld [vmem:[#allocation5 + $0xf8] sm:$0xff]
    %v151 = vld [vmem:[#allocation5 + $0x100] sm:$0xff]
    %v152 = vld [vmem:[#allocation5 + $0x108] sm:$0xff]
    %v153 = vld [vmem:[#allocation5 + $0x110] sm:$0xff]
    %v154 = vld [vmem:[#allocation5 + $0x118] sm:$0xff]
    %v155 = vld [vmem:[#allocation5 + $0x120] sm:$0xff]
    %v156 = vld [vmem:[#allocation5 + $0x128] sm:$0xff]
    %v157 = vld [vmem:[#allocation5 + $0x130] sm:$0xff]
    %v158 = vld [vmem:[#allocation5 + $0x138] sm:$0xff]
    %v159 = vld [vmem:[#allocation5 + $0x140] sm:$0xff]
    %v160 = vld [vmem:[#allocation5 + $0x148] sm:$0xff]
    %v161 = vld [vmem:[#allocation5 + $0x150] sm:$0xff]
    %v162 = vld [vmem:[#allocation5 + $0x158] sm:$0xff]
    %v163 = vld [vmem:[#allocation5 + $0x160] sm:$0xff]
    %v164 = vld [vmem:[#allocation5 + $0x168] sm:$0xff]
    %v165 = vld [vmem:[#allocation5 + $0x170] sm:$0xff]
    %v166 = vld [vmem:[#allocation5 + $0x178] sm:$0xff]
    %v167 = vld [vmem:[#allocation5 + $0x180] sm:$0xff]
    %v168 = vld [vmem:[#allocation5 + $0x188] sm:$0xff]
    %v169 = vld [vmem:[#allocation5 + $0x190] sm:$0xff]
    %v170 = vld [vmem:[#allocation5 + $0x198] sm:$0xff]
    %v171 = vld [vmem:[#allocation5 + $0x1a0] sm:$0xff]
    %v172 = vld [vmem:[#allocation5 + $0x1a8] sm:$0xff]
    %v173 = vld [vmem:[#allocation5 + $0x1b0] sm:$0xff]
    %v174 = vld [vmem:[#allocation5 + $0x1b8] sm:$0xff]
    %v175 = vld [vmem:[#allocation5 + $0x1c0] sm:$0xff]
    %v176 = vld [vmem:[#allocation5 + $0x1c8] sm:$0xff]
    %v177 = vld [vmem:[#allocation5 + $0x1d0] sm:$0xff]
    %v178 = vld [vmem:[#allocation5 + $0x1d8] sm:$0xff]
    %v179 = vld [vmem:[#allocation5 + $0x1e0] sm:$0xff]
    %v180 = vld [vmem:[#allocation5 + $0x1e8] sm:$0xff]
    %v181 = vld [vmem:[#allocation5 + $0x1f0] sm:$0xff]
    %v182 = vld [vmem:[#allocation5 + $0x1f8] sm:$0xff]
    %v183 = vld [vmem:[#allocation5 + $0x200] sm:$0xff]
    %v184 = vld [vmem:[#allocation5 + $0x208] sm:$0xff]
    %v185 = vld [vmem:[#allocation5 + $0x210] sm:$0xff]
    %v186 = vld [vmem:[#allocation5 + $0x218] sm:$0xff]
    %v187 = vld [vmem:[#allocation5 + $0x220] sm:$0xff]
    %v188 = vld [vmem:[#allocation5 + $0x228] sm:$0xff]
    %v189 = vld [vmem:[#allocation5 + $0x230] sm:$0xff]
    %v190 = vld [vmem:[#allocation5 + $0x238] sm:$0xff]
    %v191 = vld [vmem:[#allocation5 + $0x240] sm:$0xff]
    %v192 = vld [vmem:[#allocation5 + $0x248] sm:$0xff]
    %v193 = vld [vmem:[#allocation5 + $0x250] sm:$0xff]
    %v194 = vld [vmem:[#allocation5 + $0x258] sm:$0xff]
    %v195 = vld [vmem:[#allocation5 + $0x260] sm:$0xff]
    %v196 = vld [vmem:[#allocation5 + $0x268] sm:$0xff]
    %v197 = vld [vmem:[#allocation5 + $0x270] sm:$0xff]
    %v198 = vld [vmem:[#allocation5 + $0x278] sm:$0xff]
    %v199 = vld [vmem:[#allocation5 + $0x280] sm:$0xff]
    %v200 = vld [vmem:[#allocation5 + $0x288] sm:$0xff]
    %v201 = vld [vmem:[#allocation5 + $0x290] sm:$0xff]
    %v202 = vld [vmem:[#allocation5 + $0x298] sm:$0xff]
    %v203 = vld [vmem:[#allocation5 + $0x2a0] sm:$0xff]
    %v204 = vld [vmem:[#allocation5 + $0x2a8] sm:$0xff]
    %v205 = vld [vmem:[#allocation5 + $0x2b0] sm:$0xff]
    %v206 = vld [vmem:[#allocation5 + $0x2b8] sm:$0xff]
    %v207 = vld [vmem:[#allocation5 + $0x2c0] sm:$0xff]
    %v208 = vld [vmem:[#allocation5 + $0x2c8] sm:$0xff]
    %v209 = vld [vmem:[#allocation5 + $0x2d0] sm:$0xff]
    %v210 = vld [vmem:[#allocation5 + $0x2d8] sm:$0xff]
    %v211 = vld [vmem:[#allocation5 + $0x2e0] sm:$0xff]
    %v212 = vld [vmem:[#allocation5 + $0x2e8] sm:$0xff]
    %v213 = vld [vmem:[#allocation5 + $0x2f0] sm:$0xff]
    %v214 = vld [vmem:[#allocation5 + $0x2f8] sm:$0xff]
    %v215 = vld [vmem:[#allocation5 + $0x300] sm:$0xff]
    %v216 = vld [vmem:[#allocation5 + $0x308] sm:$0xff]
    %v217 = vld [vmem:[#allocation5 + $0x310] sm:$0xff]
    %v218 = vld [vmem:[#allocation5 + $0x318] sm:$0xff]
    %v219 = vld [vmem:[#allocation5 + $0x320] sm:$0xff]
    %v220 = vld [vmem:[#allocation5 + $0x328] sm:$0xff]
    %v221 = vld [vmem:[#allocation5 + $0x330] sm:$0xff]
    %v222 = vld [vmem:[#allocation5 + $0x338] sm:$0xff]
    %v223 = vld [vmem:[#allocation5 + $0x340] sm:$0xff]
    %v224 = vld [vmem:[#allocation5 + $0x348] sm:$0xff]
    %v225 = vld [vmem:[#allocation5 + $0x350] sm:$0xff]
    %v226 = vld [vmem:[#allocation5 + $0x358] sm:$0xff]
    %v227 = vld [vmem:[#allocation5 + $0x360] sm:$0xff]
    %v228 = vld [vmem:[#allocation5 + $0x368] sm:$0xff]
    %v229 = vld [vmem:[#allocation5 + $0x370] sm:$0xff]
    %v230 = vld [vmem:[#allocation5 + $0x378] sm:$0xff]
    %v231 = vld [vmem:[#allocation5 + $0x380] sm:$0xff]
    %v232 = vld [vmem:[#allocation5 + $0x388] sm:$0xff]
    %v233 = vld [vmem:[#allocation5 + $0x390] sm:$0xff]
    %v234 = vld [vmem:[#allocation5 + $0x398] sm:$0xff]
    %v235 = vld [vmem:[#allocation5 + $0x3a0] sm:$0xff]
    %v236 = vld [vmem:[#allocation5 + $0x3a8] sm:$0xff]
    %v237 = vld [vmem:[#allocation5 + $0x3b0] sm:$0xff]
    %v238 = vld [vmem:[#allocation5 + $0x3b8] sm:$0xff]
    %v239 = vld [vmem:[#allocation5 + $0x3c0] sm:$0xff]
    %v240 = vld [vmem:[#allocation5 + $0x3c8] sm:$0xff]
    %v241 = vld [vmem:[#allocation5 + $0x3d0] sm:$0xff]
    %v242 = vld [vmem:[#allocation5 + $0x3d8] sm:$0xff]
    %v243 = vld [vmem:[#allocation5 + $0x3e0] sm:$0xff]
    %v244 = vld [vmem:[#allocation5 + $0x3e8] sm:$0xff]
    %v245 = vld [vmem:[#allocation5 + $0x3f0] sm:$0xff]
    %v246 = vld [vmem:[#allocation5 + $0x3f8] sm:$0xff]
    %v247 = vld [vmem:[#allocation5 + $0x400] sm:$0xff]
    %v248 = vld [vmem:[#allocation5 + $0x408] sm:$0xff]
    %v249 = vld [vmem:[#allocation5 + $0x410] sm:$0xff]
    %v250 = vld [vmem:[#allocation5 + $0x418] sm:$0xff]
    %v251 = vld [vmem:[#allocation5 + $0x420] sm:$0xff]
    %v252 = vld [vmem:[#allocation5 + $0x428] sm:$0xff]
    %v253 = vld [vmem:[#allocation5 + $0x430] sm:$0xff]
    %v254 = vld [vmem:[#allocation5 + $0x438] sm:$0xff]
    %v255 = vld [vmem:[#allocation5 + $0x440] sm:$0xff]
    %v256 = vld [vmem:[#allocation5 + $0x448] sm:$0xff]
    %v257 = vld [vmem:[#allocation5 + $0x450] sm:$0xff]
    %v258 = vld [vmem:[#allocation5 + $0x458] sm:$0xff]
    %v259 = vld [vmem:[#allocation5 + $0x460] sm:$0xff]
    %v260 = vld [vmem:[#allocation5 + $0x468] sm:$0xff]
    %v261 = vld [vmem:[#allocation5 + $0x470] sm:$0xff]
    %v262 = vld [vmem:[#allocation5 + $0x478] sm:$0xff]
    %v263 = vld [vmem:[#allocation5 + $0x480] sm:$0xff]
    %v264 = vld [vmem:[#allocation5 + $0x488] sm:$0xff]
    %v265 = vld [vmem:[#allocation5 + $0x490] sm:$0xff]
    %v266 = vld [vmem:[#allocation5 + $0x498] sm:$0xff]
    %v267 = vld [vmem:[#allocation5 + $0x4a0] sm:$0xff]
    %v268 = vld [vmem:[#allocation5 + $0x4a8] sm:$0xff]
    %v269 = vld [vmem:[#allocation5 + $0x4b0] sm:$0xff]
    %v270 = vld [vmem:[#allocation5 + $0x4b8] sm:$0xff]
    %v271 = vld [vmem:[#allocation5 + $0x4c0] sm:$0xff]
    %v272 = vld [vmem:[#allocation5 + $0x4c8] sm:$0xff]
    %v273 = vld [vmem:[#allocation5 + $0x4d0] sm:$0xff]
    %v274 = vld [vmem:[#allocation5 + $0x4d8] sm:$0xff]
    %v275 = vld [vmem:[#allocation5 + $0x4e0] sm:$0xff]
    %v276 = vld [vmem:[#allocation5 + $0x4e8] sm:$0xff]
    %v277 = vld [vmem:[#allocation5 + $0x4f0] sm:$0xff]
    %v278 = vld [vmem:[#allocation5 + $0x4f8] sm:$0xff]
    %v279 = vld [vmem:[#allocation5 + $0x500] sm:$0xff]
    %v280 = vld [vmem:[#allocation5 + $0x508] sm:$0xff]
    %v281 = vld [vmem:[#allocation5 + $0x510] sm:$0xff]
    %v282 = vld [vmem:[#allocation5 + $0x518] sm:$0xff]
    %v283 = vld [vmem:[#allocation5 + $0x520] sm:$0xff]
    %v284 = vld [vmem:[#allocation5 + $0x528] sm:$0xff]
    %v285 = vld [vmem:[#allocation5 + $0x530] sm:$0xff]
    %v286 = vld [vmem:[#allocation5 + $0x538] sm:$0xff]
    %v287 = vld [vmem:[#allocation5 + $0x540] sm:$0xff]
    %v288 = vld [vmem:[#allocation5 + $0x548] sm:$0xff]
    %v289 = vld [vmem:[#allocation5 + $0x550] sm:$0xff]
    %v290 = vld [vmem:[#allocation5 + $0x558] sm:$0xff]
    %v291 = vld [vmem:[#allocation5 + $0x560] sm:$0xff]
    %v292 = vld [vmem:[#allocation5 + $0x568] sm:$0xff]
    %v293 = vld [vmem:[#allocation5 + $0x570] sm:$0xff]
    %v294 = vld [vmem:[#allocation5 + $0x578] sm:$0xff]
    %v295 = vld [vmem:[#allocation5 + $0x580] sm:$0xff]
    %v296 = vld [vmem:[#allocation5 + $0x588] sm:$0xff]
    %v297 = vld [vmem:[#allocation5 + $0x590] sm:$0xff]
    %v298 = vld [vmem:[#allocation5 + $0x598] sm:$0xff]
    %v299 = vld [vmem:[#allocation5 + $0x5a0] sm:$0xff]
    %v300 = vld [vmem:[#allocation5 + $0x5a8] sm:$0xff]
    %v301 = vld [vmem:[#allocation5 + $0x5b0] sm:$0xff]
    %v302 = vld [vmem:[#allocation5 + $0x5b8] sm:$0xff]
    %v303 = vld [vmem:[#allocation5 + $0x5c0] sm:$0xff]
    %v304 = vld [vmem:[#allocation5 + $0x5c8] sm:$0xff]
    %v305 = vld [vmem:[#allocation5 + $0x5d0] sm:$0xff]
    %v306 = vld [vmem:[#allocation5 + $0x5d8] sm:$0xff]
    %v307 = vld [vmem:[#allocation5 + $0x5e0] sm:$0xff]
    %v308 = vld [vmem:[#allocation5 + $0x5e8] sm:$0xff]
    %v309 = vld [vmem:[#allocation5 + $0x5f0] sm:$0xff]
    %v310 = vld [vmem:[#allocation5 + $0x5f8] sm:$0xff]
    %v311 = vld [vmem:[#allocation5 + $0x600] sm:$0xff]
    %v312 = vld [vmem:[#allocation5 + $0x608] sm:$0xff]
    %v313 = vld [vmem:[#allocation5 + $0x610] sm:$0xff]
    %v314 = vld [vmem:[#allocation5 + $0x618] sm:$0xff]
    %v315 = vld [vmem:[#allocation5 + $0x620] sm:$0xff]
    %v316 = vld [vmem:[#allocation5 + $0x628] sm:$0xff]
    %v317 = vld [vmem:[#allocation5 + $0x630] sm:$0xff]
    %v318 = vld [vmem:[#allocation5 + $0x638] sm:$0xff]
    %v319 = vld [vmem:[#allocation5 + $0x640] sm:$0xff]
    %v320 = vld [vmem:[#allocation5 + $0x648] sm:$0xff]
    %v321 = vld [vmem:[#allocation5 + $0x650] sm:$0xff]
    %v322 = vld [vmem:[#allocation5 + $0x658] sm:$0xff]
    %v323 = vld [vmem:[#allocation5 + $0x660] sm:$0xff]
    %v324 = vld [vmem:[#allocation5 + $0x668] sm:$0xff]
    %v325 = vld [vmem:[#allocation5 + $0x670] sm:$0xff]
    %v326 = vld [vmem:[#allocation5 + $0x678] sm:$0xff]
    %v327 = vld [vmem:[#allocation5 + $0x680] sm:$0xff]
    %v328 = vld [vmem:[#allocation5 + $0x688] sm:$0xff]
    %v329 = vld [vmem:[#allocation5 + $0x690] sm:$0xff]
    %v330 = vld [vmem:[#allocation5 + $0x698] sm:$0xff]
    %v331 = vld [vmem:[#allocation5 + $0x6a0] sm:$0xff]
    %v332 = vld [vmem:[#allocation5 + $0x6a8] sm:$0xff]
    %v333 = vld [vmem:[#allocation5 + $0x6b0] sm:$0xff]
    %v334 = vld [vmem:[#allocation5 + $0x6b8] sm:$0xff]
    %v335 = vld [vmem:[#allocation5 + $0x6c0] sm:$0xff]
    %v336 = vld [vmem:[#allocation5 + $0x6c8] sm:$0xff]
    %v337 = vld [vmem:[#allocation5 + $0x6d0] sm:$0xff]
    %v338 = vld [vmem:[#allocation5 + $0x6d8] sm:$0xff]
    %v339 = vld [vmem:[#allocation5 + $0x6e0] sm:$0xff]
    %v340 = vld [vmem:[#allocation5 + $0x6e8] sm:$0xff]
    %v341 = vld [vmem:[#allocation5 + $0x6f0] sm:$0xff]
    %v342 = vld [vmem:[#allocation5 + $0x6f8] sm:$0xff]
    %v343 = vld [vmem:[#allocation5 + $0x700] sm:$0xff]
    %v344 = vld [vmem:[#allocation5 + $0x708] sm:$0xff]
    %v345 = vld [vmem:[#allocation5 + $0x710] sm:$0xff]
    %v346 = vld [vmem:[#allocation5 + $0x718] sm:$0xff]
    %v347 = vld [vmem:[#allocation5 + $0x720] sm:$0xff]
    %v348 = vld [vmem:[#allocation5 + $0x728] sm:$0xff]
    %v349 = vld [vmem:[#allocation5 + $0x730] sm:$0xff]
    %v350 = vld [vmem:[#allocation5 + $0x738] sm:$0xff]
    %v351 = vld [vmem:[#allocation5 + $0x740] sm:$0xff]
    %v352 = vld [vmem:[#allocation5 + $0x748] sm:$0xff]
    %v353 = vld [vmem:[#allocation5 + $0x750] sm:$0xff]
    %v354 = vld [vmem:[#allocation5 + $0x758] sm:$0xff]
    %v355 = vld [vmem:[#allocation5 + $0x760] sm:$0xff]
    %v356 = vld [vmem:[#allocation5 + $0x768] sm:$0xff]
    %v357 = vld [vmem:[#allocation5 + $0x770] sm:$0xff]
    %v358 = vld [vmem:[#allocation5 + $0x778] sm:$0xff]
    %v359 = vld [vmem:[#allocation5 + $0x780] sm:$0xff]
    %v360 = vld [vmem:[#allocation5 + $0x788] sm:$0xff]
    %v361 = vld [vmem:[#allocation5 + $0x790] sm:$0xff]
    %v362 = vld [vmem:[#allocation5 + $0x798] sm:$0xff]
    %v363 = vld [vmem:[#allocation5 + $0x7a0] sm:$0xff]
    %v364 = vld [vmem:[#allocation5 + $0x7a8] sm:$0xff]
    %v365 = vld [vmem:[#allocation5 + $0x7b0] sm:$0xff]
    %v366 = vld [vmem:[#allocation5 + $0x7b8] sm:$0xff]
    %v367 = vld [vmem:[#allocation5 + $0x7c0] sm:$0xff]
    %v368 = vld [vmem:[#allocation5 + $0x7c8] sm:$0xff]
    %v369 = vld [vmem:[#allocation5 + $0x7d0] sm:$0xff]
    %v370 = vld [vmem:[#allocation5 + $0x7d8] sm:$0xff]
    %v371 = vld [vmem:[#allocation5 + $0x7e0] sm:$0xff]
    %v372 = vld [vmem:[#allocation5 + $0x7e8] sm:$0xff]
    %v373 = vld [vmem:[#allocation5 + $0x7f0] sm:$0xff]
    %v374 = vld [vmem:[#allocation5 + $0x7f8] sm:$0xff]
    %v375 = vld [vmem:[#allocation5 + $0x800] sm:$0xff]
    %v376 = vld [vmem:[#allocation5 + $0x808] sm:$0xff]
    %v377 = vld [vmem:[#allocation5 + $0x810] sm:$0xff]
    %v378 = vld [vmem:[#allocation5 + $0x818] sm:$0xff]
    %v379 = vld [vmem:[#allocation5 + $0x820] sm:$0xff]
    %v380 = vld [vmem:[#allocation5 + $0x828] sm:$0xff]
    %v381 = vld [vmem:[#allocation5 + $0x830] sm:$0xff]
    %v382 = vld [vmem:[#allocation5 + $0x838] sm:$0xff]
    %v383 = vld [vmem:[#allocation5 + $0x840] sm:$0xff]
    %v384 = vld [vmem:[#allocation5 + $0x848] sm:$0xff]
    %v385 = vld [vmem:[#allocation5 + $0x850] sm:$0xff]
    %v386 = vld [vmem:[#allocation5 + $0x858] sm:$0xff]
    %v387 = vld [vmem:[#allocation5 + $0x860] sm:$0xff]
    %v388 = vld [vmem:[#allocation5 + $0x868] sm:$0xff]
    %v389 = vld [vmem:[#allocation5 + $0x870] sm:$0xff]
    %v390 = vld [vmem:[#allocation5 + $0x878] sm:$0xff]
    %v391 = vld [vmem:[#allocation5 + $0x880] sm:$0xff]
    %v392 = vld [vmem:[#allocation5 + $0x888] sm:$0xff]
    %v393 = vld [vmem:[#allocation5 + $0x890] sm:$0xff]
    %v394 = vld [vmem:[#allocation5 + $0x898] sm:$0xff]
    %v395 = vld [vmem:[#allocation5 + $0x8a0] sm:$0xff]
    %v396 = vld [vmem:[#allocation5 + $0x8a8] sm:$0xff]
    %v397 = vld [vmem:[#allocation5 + $0x8b0] sm:$0xff]
    %v398 = vld [vmem:[#allocation5 + $0x8b8] sm:$0xff]
    %v399 = vld [vmem:[#allocation5 + $0x8c0] sm:$0xff]
    %v400 = vld [vmem:[#allocation5 + $0x8c8] sm:$0xff]
    %v401 = vld [vmem:[#allocation5 + $0x8d0] sm:$0xff]
    %v402 = vld [vmem:[#allocation5 + $0x8d8] sm:$0xff]
    %v403 = vld [vmem:[#allocation5 + $0x8e0] sm:$0xff]
    %v404 = vld [vmem:[#allocation5 + $0x8e8] sm:$0xff]
    %v405 = vld [vmem:[#allocation5 + $0x8f0] sm:$0xff]
    %v406 = vld [vmem:[#allocation5 + $0x8f8] sm:$0xff]
    %v407 = vld [vmem:[#allocation5 + $0x900] sm:$0xff]
    %v408 = vld [vmem:[#allocation5 + $0x908] sm:$0xff]
    %v409 = vld [vmem:[#allocation5 + $0x910] sm:$0xff]
    %v410 = vld [vmem:[#allocation5 + $0x918] sm:$0xff]
    %v411 = vld [vmem:[#allocation5 + $0x920] sm:$0xff]
    %v412 = vld [vmem:[#allocation5 + $0x928] sm:$0xff]
    %v413 = vld [vmem:[#allocation5 + $0x930] sm:$0xff]
    %v414 = vld [vmem:[#allocation5 + $0x938] sm:$0xff]
    %v415 = vld [vmem:[#allocation5 + $0x940] sm:$0xff]
    %v416 = vld [vmem:[#allocation5 + $0x948] sm:$0xff]
    %v417 = vld [vmem:[#allocation5 + $0x950] sm:$0xff]
    %v418 = vld [vmem:[#allocation5 + $0x958] sm:$0xff]
    %v419 = vld [vmem:[#allocation5 + $0x960] sm:$0xff]
    %v420 = vld [vmem:[#allocation5 + $0x968] sm:$0xff]
    %v421 = vld [vmem:[#allocation5 + $0x970] sm:$0xff]
    %v422 = vld [vmem:[#allocation5 + $0x978] sm:$0xff]
    %v423 = vld [vmem:[#allocation5 + $0x980] sm:$0xff]
    %v424 = vld [vmem:[#allocation5 + $0x988] sm:$0xff]
    %v425 = vld [vmem:[#allocation5 + $0x990] sm:$0xff]
    %v426 = vld [vmem:[#allocation5 + $0x998] sm:$0xff]
    %v427 = vld [vmem:[#allocation5 + $0x9a0] sm:$0xff]
    %v428 = vld [vmem:[#allocation5 + $0x9a8] sm:$0xff]
    %v429 = vld [vmem:[#allocation5 + $0x9b0] sm:$0xff]
    %v430 = vld [vmem:[#allocation5 + $0x9b8] sm:$0xff]
    %v431 = vld [vmem:[#allocation5 + $0x9c0] sm:$0xff]
    %v432 = vld [vmem:[#allocation5 + $0x9c8] sm:$0xff]
    %v433 = vld [vmem:[#allocation5 + $0x9d0] sm:$0xff]
    %v434 = vld [vmem:[#allocation5 + $0x9d8] sm:$0xff]
    %v435 = vld [vmem:[#allocation5 + $0x9e0] sm:$0xff]
    %v436 = vld [vmem:[#allocation5 + $0x9e8] sm:$0xff]
    %v437 = vld [vmem:[#allocation5 + $0x9f0] sm:$0xff]
    %v438 = vld [vmem:[#allocation5 + $0x9f8] sm:$0xff]
    %v439 = vld [vmem:[#allocation5 + $0xa00] sm:$0xff]
    %v440 = vld [vmem:[#allocation5 + $0xa08] sm:$0xff]
    %v441 = vld [vmem:[#allocation5 + $0xa10] sm:$0xff]
    %v442 = vld [vmem:[#allocation5 + $0xa18] sm:$0xff]
    %v443 = vld [vmem:[#allocation5 + $0xa20] sm:$0xff]
    %v444 = vld [vmem:[#allocation5 + $0xa28] sm:$0xff]
    %v445 = vld [vmem:[#allocation5 + $0xa30] sm:$0xff]
    %v446 = vld [vmem:[#allocation5 + $0xa38] sm:$0xff]
    %v447 = vld [vmem:[#allocation5 + $0xa40] sm:$0xff]
    %v448 = vld [vmem:[#allocation5 + $0xa48] sm:$0xff]
    %v449 = vld [vmem:[#allocation5 + $0xa50] sm:$0xff]
    %v450 = vld [vmem:[#allocation5 + $0xa58] sm:$0xff]
    %v451 = vld [vmem:[#allocation5 + $0xa60] sm:$0xff]
    %v452 = vld [vmem:[#allocation5 + $0xa68] sm:$0xff]
    %v453 = vld [vmem:[#allocation5 + $0xa70] sm:$0xff]
    %v454 = vld [vmem:[#allocation5 + $0xa78] sm:$0xff]
    %v455 = vld [vmem:[#allocation5 + $0xa80] sm:$0xff]
    %v456 = vld [vmem:[#allocation5 + $0xa88] sm:$0xff]
    %v457 = vld [vmem:[#allocation5 + $0xa90] sm:$0xff]
    %v458 = vld [vmem:[#allocation5 + $0xa98] sm:$0xff]
    %v459 = vld [vmem:[#allocation5 + $0xaa0] sm:$0xff]
    %v460 = vld [vmem:[#allocation5 + $0xaa8] sm:$0xff]
    %v461 = vld [vmem:[#allocation5 + $0xab0] sm:$0xff]
    %v462 = vld [vmem:[#allocation5 + $0xab8] sm:$0xff]
    %v463 = vld [vmem:[#allocation5 + $0xac0] sm:$0xff]
    %v464 = vld [vmem:[#allocation5 + $0xac8] sm:$0xff]
    %v465 = vld [vmem:[#allocation5 + $0xad0] sm:$0xff]
    %v466 = vld [vmem:[#allocation5 + $0xad8] sm:$0xff]
    %v467 = vld [vmem:[#allocation5 + $0xae0] sm:$0xff]
    %v468 = vld [vmem:[#allocation5 + $0xae8] sm:$0xff]
    %v469 = vld [vmem:[#allocation5 + $0xaf0] sm:$0xff]
    %v470 = vld [vmem:[#allocation5 + $0xaf8] sm:$0xff]
    %v471 = vld [vmem:[#allocation5 + $0xb00] sm:$0xff]
    %v472 = vld [vmem:[#allocation5 + $0xb08] sm:$0xff]
    %v473 = vld [vmem:[#allocation5 + $0xb10] sm:$0xff]
    %v474 = vld [vmem:[#allocation5 + $0xb18] sm:$0xff]
    %v475 = vld [vmem:[#allocation5 + $0xb20] sm:$0xff]
    %v476 = vld [vmem:[#allocation5 + $0xb28] sm:$0xff]
    %v477 = vld [vmem:[#allocation5 + $0xb30] sm:$0xff]
    %v478 = vld [vmem:[#allocation5 + $0xb38] sm:$0xff]
    %v479 = vld [vmem:[#allocation5 + $0xb40] sm:$0xff]
    %v480 = vld [vmem:[#allocation5 + $0xb48] sm:$0xff]
    %v481 = vld [vmem:[#allocation5 + $0xb50] sm:$0xff]
    %v482 = vld [vmem:[#allocation5 + $0xb58] sm:$0xff]
    %v483 = vld [vmem:[#allocation5 + $0xb60] sm:$0xff]
    %v484 = vld [vmem:[#allocation5 + $0xb68] sm:$0xff]
    %v485 = vld [vmem:[#allocation5 + $0xb70] sm:$0xff]
    %v486 = vld [vmem:[#allocation5 + $0xb78] sm:$0xff]
    %v487 = vld [vmem:[#allocation5 + $0xb80] sm:$0xff]
    %v488 = vld [vmem:[#allocation5 + $0xb88] sm:$0xff]
    %v489 = vld [vmem:[#allocation5 + $0xb90] sm:$0xff]
    %v490 = vld [vmem:[#allocation5 + $0xb98] sm:$0xff]
    %v491 = vld [vmem:[#allocation5 + $0xba0] sm:$0xff]
    %v492 = vld [vmem:[#allocation5 + $0xba8] sm:$0xff]
    %v493 = vld [vmem:[#allocation5 + $0xbb0] sm:$0xff]
    %v494 = vld [vmem:[#allocation5 + $0xbb8] sm:$0xff]
    %v495 = vld [vmem:[#allocation5 + $0xbc0] sm:$0xff]
    %v496 = vld [vmem:[#allocation5 + $0xbc8] sm:$0xff]
    %v497 = vld [vmem:[#allocation5 + $0xbd0] sm:$0xff]
    %v498 = vld [vmem:[#allocation5 + $0xbd8] sm:$0xff]
    %v499 = vld [vmem:[#allocation5 + $0xbe0] sm:$0xff]
    %v500 = vld [vmem:[#allocation5 + $0xbe8] sm:$0xff]
    %v501 = vld [vmem:[#allocation5 + $0xbf0] sm:$0xff]
    %v502 = vld [vmem:[#allocation5 + $0xbf8] sm:$0xff]
    %v503 = vld [vmem:[#allocation5 + $0xc00] sm:$0xff]
    %v504 = vld [vmem:[#allocation5 + $0xc08] sm:$0xff]
    %v505 = vld [vmem:[#allocation5 + $0xc10] sm:$0xff]
    %v506 = vld [vmem:[#allocation5 + $0xc18] sm:$0xff]
    %v507 = vld [vmem:[#allocation5 + $0xc20] sm:$0xff]
    %v508 = vld [vmem:[#allocation5 + $0xc28] sm:$0xff]
    %v509 = vld [vmem:[#allocation5 + $0xc30] sm:$0xff]
    %v510 = vld [vmem:[#allocation5 + $0xc38] sm:$0xff]
    %v511 = vld [vmem:[#allocation5 + $0xc40] sm:$0xff]
    %v512 = vld [vmem:[#allocation5 + $0xc48] sm:$0xff]
    %v513 = vld [vmem:[#allocation5 + $0xc50] sm:$0xff]
    %v514 = vld [vmem:[#allocation5 + $0xc58] sm:$0xff]
    %v515 = vld [vmem:[#allocation5 + $0xc60] sm:$0xff]
    %v516 = vld [vmem:[#allocation5 + $0xc68] sm:$0xff]
    %v517 = vld [vmem:[#allocation5 + $0xc70] sm:$0xff]
    %v518 = vld [vmem:[#allocation5 + $0xc78] sm:$0xff]
    %v519 = vld [vmem:[#allocation5 + $0xc80] sm:$0xff]
    %v520 = vld [vmem:[#allocation5 + $0xc88] sm:$0xff]
    %v521 = vld [vmem:[#allocation5 + $0xc90] sm:$0xff]
    %v522 = vld [vmem:[#allocation5 + $0xc98] sm:$0xff]
    %v523 = vld [vmem:[#allocation5 + $0xca0] sm:$0xff]
    %v524 = vld [vmem:[#allocation5 + $0xca8] sm:$0xff]
    %v525 = vld [vmem:[#allocation5 + $0xcb0] sm:$0xff]
    %v526 = vld [vmem:[#allocation5 + $0xcb8] sm:$0xff]
    %v527 = vld [vmem:[#allocation5 + $0xcc0] sm:$0xff]
    %v528 = vld [vmem:[#allocation5 + $0xcc8] sm:$0xff]
    %v529 = vld [vmem:[#allocation5 + $0xcd0] sm:$0xff]
    %v530 = vld [vmem:[#allocation5 + $0xcd8] sm:$0xff]
    %v531 = vld [vmem:[#allocation5 + $0xce0] sm:$0xff]
    %v532 = vld [vmem:[#allocation5 + $0xce8] sm:$0xff]
    %v533 = vld [vmem:[#allocation5 + $0xcf0] sm:$0xff]
    %v534 = vld [vmem:[#allocation5 + $0xcf8] sm:$0xff]
    %v535 = vld [vmem:[#allocation5 + $0xd00] sm:$0xff]
    %v536 = vld [vmem:[#allocation5 + $0xd08] sm:$0xff]
    %v537 = vld [vmem:[#allocation5 + $0xd10] sm:$0xff]
    %v538 = vld [vmem:[#allocation5 + $0xd18] sm:$0xff]
    %v539 = vld [vmem:[#allocation5 + $0xd20] sm:$0xff]
    %v540 = vld [vmem:[#allocation5 + $0xd28] sm:$0xff]
    %v541 = vld [vmem:[#allocation5 + $0xd30] sm:$0xff]
    %v542 = vld [vmem:[#allocation5 + $0xd38] sm:$0xff]
    %v543 = vld [vmem:[#allocation5 + $0xd40] sm:$0xff]
    %v544 = vld [vmem:[#allocation5 + $0xd48] sm:$0xff]
    %v545 = vld [vmem:[#allocation5 + $0xd50] sm:$0xff]
    %v546 = vld [vmem:[#allocation5 + $0xd58] sm:$0xff]
    %v547 = vld [vmem:[#allocation5 + $0xd60] sm:$0xff]
    %v548 = vld [vmem:[#allocation5 + $0xd68] sm:$0xff]
    %v549 = vld [vmem:[#allocation5 + $0xd70] sm:$0xff]
    %v550 = vld [vmem:[#allocation5 + $0xd78] sm:$0xff]
    %v551 = vld [vmem:[#allocation5 + $0xd80] sm:$0xff]
    %v552 = vld [vmem:[#allocation5 + $0xd88] sm:$0xff]
    %v553 = vld [vmem:[#allocation5 + $0xd90] sm:$0xff]
    %v554 = vld [vmem:[#allocation5 + $0xd98] sm:$0xff]
    %v555 = vld [vmem:[#allocation5 + $0xda0] sm:$0xff]
    %v556 = vld [vmem:[#allocation5 + $0xda8] sm:$0xff]
    %v557 = vld [vmem:[#allocation5 + $0xdb0] sm:$0xff]
    %v558 = vld [vmem:[#allocation5 + $0xdb8] sm:$0xff]
    %v559 = vld [vmem:[#allocation5 + $0xdc0] sm:$0xff]
    %v560 = vld [vmem:[#allocation5 + $0xdc8] sm:$0xff]
    %v561 = vld [vmem:[#allocation5 + $0xdd0] sm:$0xff]
    %v562 = vld [vmem:[#allocation5 + $0xdd8] sm:$0xff]
    %v563 = vld [vmem:[#allocation5 + $0xde0] sm:$0xff]
    %v564 = vld [vmem:[#allocation5 + $0xde8] sm:$0xff]
    %v565 = vld [vmem:[#allocation5 + $0xdf0] sm:$0xff]
    %v566 = vld [vmem:[#allocation5 + $0xdf8] sm:$0xff]
    %v567 = vld [vmem:[#allocation5 + $0xe00] sm:$0xff]
    %v568 = vld [vmem:[#allocation5 + $0xe08] sm:$0xff]
    %v569 = vld [vmem:[#allocation5 + $0xe10] sm:$0xff]
    %v570 = vld [vmem:[#allocation5 + $0xe18] sm:$0xff]
    %v571 = vld [vmem:[#allocation5 + $0xe20] sm:$0xff]
    %v572 = vld [vmem:[#allocation5 + $0xe28] sm:$0xff]
    %v573 = vld [vmem:[#allocation5 + $0xe30] sm:$0xff]
    %v574 = vld [vmem:[#allocation5 + $0xe38] sm:$0xff]
    %v575 = vld [vmem:[#allocation5 + $0xe40] sm:$0xff]
    %v576 = vld [vmem:[#allocation5 + $0xe48] sm:$0xff]
    %v577 = vld [vmem:[#allocation5 + $0xe50] sm:$0xff]
    %v578 = vld [vmem:[#allocation5 + $0xe58] sm:$0xff]
    %v579 = vld [vmem:[#allocation5 + $0xe60] sm:$0xff]
    %v580 = vld [vmem:[#allocation5 + $0xe68] sm:$0xff]
    %v581 = vld [vmem:[#allocation5 + $0xe70] sm:$0xff]
    %v582 = vld [vmem:[#allocation5 + $0xe78] sm:$0xff]
    %v583 = vld [vmem:[#allocation5 + $0xe80] sm:$0xff]
    %v584 = vld [vmem:[#allocation5 + $0xe88] sm:$0xff]
    %v585 = vld [vmem:[#allocation5 + $0xe90] sm:$0xff]
    %v586 = vld [vmem:[#allocation5 + $0xe98] sm:$0xff]
    %v587 = vld [vmem:[#allocation5 + $0xea0] sm:$0xff]
    %v588 = vld [vmem:[#allocation5 + $0xea8] sm:$0xff]
    %v589 = vld [vmem:[#allocation5 + $0xeb0] sm:$0xff]
    %v590 = vld [vmem:[#allocation5 + $0xeb8] sm:$0xff]
    %v591 = vld [vmem:[#allocation5 + $0xec0] sm:$0xff]
    %v592 = vld [vmem:[#allocation5 + $0xec8] sm:$0xff]
    %v593 = vld [vmem:[#allocation5 + $0xed0] sm:$0xff]
    %v594 = vld [vmem:[#allocation5 + $0xed8] sm:$0xff]
    %v595 = vld [vmem:[#allocation5 + $0xee0] sm:$0xff]
    %v596 = vld [vmem:[#allocation5 + $0xee8] sm:$0xff]
    %v597 = vld [vmem:[#allocation5 + $0xef0] sm:$0xff]
    %v598 = vld [vmem:[#allocation5 + $0xef8] sm:$0xff]
    %v599 = vld [vmem:[#allocation5 + $0xf00] sm:$0xff]
    %v600 = vld [vmem:[#allocation5 + $0xf08] sm:$0xff]
    %v601 = vld [vmem:[#allocation5 + $0xf10] sm:$0xff]
    %v602 = vld [vmem:[#allocation5 + $0xf18] sm:$0xff]
    %v603 = vld [vmem:[#allocation5 + $0xf20] sm:$0xff]
    %v604 = vld [vmem:[#allocation5 + $0xf28] sm:$0xff]
    %v605 = vld [vmem:[#allocation5 + $0xf30] sm:$0xff]
    %v606 = vld [vmem:[#allocation5 + $0xf38] sm:$0xff]
    %v607 = vld [vmem:[#allocation5 + $0xf40] sm:$0xff]
    %v608 = vld [vmem:[#allocation5 + $0xf48] sm:$0xff]
    %v609 = vld [vmem:[#allocation5 + $0xf50] sm:$0xff]
    %v610 = vld [vmem:[#allocation5 + $0xf58] sm:$0xff]
    %v611 = vld [vmem:[#allocation5 + $0xf60] sm:$0xff]
    %v612 = vld [vmem:[#allocation5 + $0xf68] sm:$0xff]
    %v613 = vld [vmem:[#allocation5 + $0xf70] sm:$0xff]
    %v614 = vld [vmem:[#allocation5 + $0xf78] sm:$0xff]
    %v615 = vld [vmem:[#allocation5 + $0xf80] sm:$0xff]
    %v616 = vld [vmem:[#allocation5 + $0xf88] sm:$0xff]
    %v617 = vld [vmem:[#allocation5 + $0xf90] sm:$0xff]
    %v618 = vld [vmem:[#allocation5 + $0xf98] sm:$0xff]
    %v619 = vld [vmem:[#allocation5 + $0xfa0] sm:$0xff]
    %v620 = vld [vmem:[#allocation5 + $0xfa8] sm:$0xff]
    %v621 = vld [vmem:[#allocation5 + $0xfb0] sm:$0xff]
    %v622 = vld [vmem:[#allocation5 + $0xfb8] sm:$0xff]
    %v623 = vld [vmem:[#allocation5 + $0xfc0] sm:$0xff]
    %v624 = vld [vmem:[#allocation5 + $0xfc8] sm:$0xff]
    %v625 = vld [vmem:[#allocation5 + $0xfd0] sm:$0xff]
    %v626 = vld [vmem:[#allocation5 + $0xfd8] sm:$0xff]
    %v627 = vld [vmem:[#allocation5 + $0xfe0] sm:$0xff]
    %v628 = vld [vmem:[#allocation5 + $0xfe8] sm:$0xff]
    %v629 = vld [vmem:[#allocation5 + $0xff0] sm:$0xff]
    %v630 = vld [vmem:[#allocation5 + $0xff8] sm:$0xff]
    %v631 = vld [vmem:[#allocation5 + $0x1000] sm:$0xff]
    %v632 = vld [vmem:[#allocation5 + $0x1008] sm:$0xff]
    %v633 = vld [vmem:[#allocation5 + $0x1010] sm:$0xff]
    %v634 = vld [vmem:[#allocation5 + $0x1018] sm:$0xff]
    %v635 = vld [vmem:[#allocation5 + $0x1020] sm:$0xff]
    %v636 = vld [vmem:[#allocation5 + $0x1028] sm:$0xff]
    %v637 = vld [vmem:[#allocation5 + $0x1030] sm:$0xff]
    %v638 = vld [vmem:[#allocation5 + $0x1038] sm:$0xff]
    %v639 = vld [vmem:[#allocation5 + $0x1040] sm:$0xff]
    %v640 = vld [vmem:[#allocation5 + $0x1048] sm:$0xff]
    %v641 = vld [vmem:[#allocation5 + $0x1050] sm:$0xff]
    %v642 = vld [vmem:[#allocation5 + $0x1058] sm:$0xff]
    %v643 = vld [vmem:[#allocation5 + $0x1060] sm:$0xff]
    %v644 = vld [vmem:[#allocation5 + $0x1068] sm:$0xff]
    %v645 = vld [vmem:[#allocation5 + $0x1070] sm:$0xff]
    %v646 = vld [vmem:[#allocation5 + $0x1078] sm:$0xff]
    %v647 = vld [vmem:[#allocation5 + $0x1080] sm:$0xff]
    %v648 = vld [vmem:[#allocation5 + $0x1088] sm:$0xff]
    %v649 = vld [vmem:[#allocation5 + $0x1090] sm:$0xff]
    %v650 = vld [vmem:[#allocation5 + $0x1098] sm:$0xff]
    %v651 = vld [vmem:[#allocation5 + $0x10a0] sm:$0xff]
    %v652 = vld [vmem:[#allocation5 + $0x10a8] sm:$0xff]
    %v653 = vld [vmem:[#allocation5 + $0x10b0] sm:$0xff]
    %v654 = vld [vmem:[#allocation5 + $0x10b8] sm:$0xff]
    %v655 = vld [vmem:[#allocation5 + $0x10c0] sm:$0xff]
    %v656 = vld [vmem:[#allocation5 + $0x10c8] sm:$0xff]
    %v657 = vld [vmem:[#allocation5 + $0x10d0] sm:$0xff]
    %v658 = vld [vmem:[#allocation5 + $0x10d8] sm:$0xff]
    %v659 = vld [vmem:[#allocation5 + $0x10e0] sm:$0xff]
    %v660 = vld [vmem:[#allocation5 + $0x10e8] sm:$0xff]
    %v661 = vld [vmem:[#allocation5 + $0x10f0] sm:$0xff]
    %v662 = vld [vmem:[#allocation5 + $0x10f8] sm:$0xff]
    %v663 = vld [vmem:[#allocation5 + $0x1100] sm:$0xff]
    %v664 = vld [vmem:[#allocation5 + $0x1108] sm:$0xff]
    %v665 = vld [vmem:[#allocation5 + $0x1110] sm:$0xff]
    %v666 = vld [vmem:[#allocation5 + $0x1118] sm:$0xff]
    %v667 = vld [vmem:[#allocation5 + $0x1120] sm:$0xff]
    %v668 = vld [vmem:[#allocation5 + $0x1128] sm:$0xff]
    %v669 = vld [vmem:[#allocation5 + $0x1130] sm:$0xff]
    %v670 = vld [vmem:[#allocation5 + $0x1138] sm:$0xff]
    %v671 = vld [vmem:[#allocation5 + $0x1140] sm:$0xff]
    %v672 = vld [vmem:[#allocation5 + $0x1148] sm:$0xff]
    %v673 = vld [vmem:[#allocation5 + $0x1150] sm:$0xff]
    %v674 = vld [vmem:[#allocation5 + $0x1158] sm:$0xff]
    %v675 = vld [vmem:[#allocation5 + $0x1160] sm:$0xff]
    %v676 = vld [vmem:[#allocation5 + $0x1168] sm:$0xff]
    %v677 = vld [vmem:[#allocation5 + $0x1170] sm:$0xff]
    %v678 = vld [vmem:[#allocation5 + $0x1178] sm:$0xff]
    %v679 = vld [vmem:[#allocation5 + $0x1180] sm:$0xff]
    %v680 = vld [vmem:[#allocation5 + $0x1188] sm:$0xff]
    %v681 = vld [vmem:[#allocation5 + $0x1190] sm:$0xff]
    %v682 = vld [vmem:[#allocation5 + $0x1198] sm:$0xff]
    %v683 = vld [vmem:[#allocation5 + $0x11a0] sm:$0xff]
    %v684 = vld [vmem:[#allocation5 + $0x11a8] sm:$0xff]
    %v685 = vld [vmem:[#allocation5 + $0x11b0] sm:$0xff]
    %v686 = vld [vmem:[#allocation5 + $0x11b8] sm:$0xff]
    %v687 = vld [vmem:[#allocation5 + $0x11c0] sm:$0xff]
    %v688 = vld [vmem:[#allocation5 + $0x11c8] sm:$0xff]
    %v689 = vld [vmem:[#allocation5 + $0x11d0] sm:$0xff]
    %v690 = vld [vmem:[#allocation5 + $0x11d8] sm:$0xff]
    %v691 = vld [vmem:[#allocation5 + $0x11e0] sm:$0xff]
    %v692 = vld [vmem:[#allocation5 + $0x11e8] sm:$0xff]
    %v693 = vld [vmem:[#allocation5 + $0x11f0] sm:$0xff]
    %v694 = vld [vmem:[#allocation5 + $0x11f8] sm:$0xff]
    %v695 = vld [vmem:[#allocation5 + $0x1200] sm:$0xff]
    %v696 = vld [vmem:[#allocation5 + $0x1208] sm:$0xff]
    %v697 = vld [vmem:[#allocation5 + $0x1210] sm:$0xff]
    %v698 = vld [vmem:[#allocation5 + $0x1218] sm:$0xff]
    %v699 = vld [vmem:[#allocation5 + $0x1220] sm:$0xff]
    %v700 = vld [vmem:[#allocation5 + $0x1228] sm:$0xff]
    %v701 = vld [vmem:[#allocation5 + $0x1230] sm:$0xff]
    %v702 = vld [vmem:[#allocation5 + $0x1238] sm:$0xff]
    %v703 = vld [vmem:[#allocation5 + $0x1240] sm:$0xff]
    %v704 = vld [vmem:[#allocation5 + $0x1248] sm:$0xff]
    %v705 = vld [vmem:[#allocation5 + $0x1250] sm:$0xff]
    %v706 = vld [vmem:[#allocation5 + $0x1258] sm:$0xff]
    %v707 = vld [vmem:[#allocation5 + $0x1260] sm:$0xff]
    %v708 = vld [vmem:[#allocation5 + $0x1268] sm:$0xff]
    %v709 = vld [vmem:[#allocation5 + $0x1270] sm:$0xff]
    %v710 = vld [vmem:[#allocation5 + $0x1278] sm:$0xff]
    %v711 = vld [vmem:[#allocation5 + $0x1280] sm:$0xff]
    %v712 = vld [vmem:[#allocation5 + $0x1288] sm:$0xff]
    %v713 = vld [vmem:[#allocation5 + $0x1290] sm:$0xff]
    %v714 = vld [vmem:[#allocation5 + $0x1298] sm:$0xff]
    %v715 = vld [vmem:[#allocation5 + $0x12a0] sm:$0xff]
    %v716 = vld [vmem:[#allocation5 + $0x12a8] sm:$0xff]
    %v717 = vld [vmem:[#allocation5 + $0x12b0] sm:$0xff]
    %v718 = vld [vmem:[#allocation5 + $0x12b8] sm:$0xff]
    %v719 = vld [vmem:[#allocation5 + $0x12c0] sm:$0xff]
    %v720 = vld [vmem:[#allocation5 + $0x12c8] sm:$0xff]
    %v721 = vld [vmem:[#allocation5 + $0x12d0] sm:$0xff]
    %v722 = vld [vmem:[#allocation5 + $0x12d8] sm:$0xff]
    %v723 = vld [vmem:[#allocation5 + $0x12e0] sm:$0xff]
    %v724 = vld [vmem:[#allocation5 + $0x12e8] sm:$0xff]
    %v725 = vld [vmem:[#allocation5 + $0x12f0] sm:$0xff]
    %v726 = vld [vmem:[#allocation5 + $0x12f8] sm:$0xff]
    %v727 = vld [vmem:[#allocation5 + $0x1300] sm:$0xff]
    %v728 = vld [vmem:[#allocation5 + $0x1308] sm:$0xff]
    %v729 = vld [vmem:[#allocation5 + $0x1310] sm:$0xff]
    %v730 = vld [vmem:[#allocation5 + $0x1318] sm:$0xff]
    %v731 = vld [vmem:[#allocation5 + $0x1320] sm:$0xff]
    %v732 = vld [vmem:[#allocation5 + $0x1328] sm:$0xff]
    %v733 = vld [vmem:[#allocation5 + $0x1330] sm:$0xff]
    %v734 = vld [vmem:[#allocation5 + $0x1338] sm:$0xff]
    %v735 = vld [vmem:[#allocation5 + $0x1340] sm:$0xff]
    %v736 = vld [vmem:[#allocation5 + $0x1348] sm:$0xff]
    %v737 = vld [vmem:[#allocation5 + $0x1350] sm:$0xff]
    %v738 = vld [vmem:[#allocation5 + $0x1358] sm:$0xff]
    %v739 = vld [vmem:[#allocation5 + $0x1360] sm:$0xff]
    %v740 = vld [vmem:[#allocation5 + $0x1368] sm:$0xff]
    %v741 = vld [vmem:[#allocation5 + $0x1370] sm:$0xff]
    %v742 = vld [vmem:[#allocation5 + $0x1378] sm:$0xff]
    %v743 = vld [vmem:[#allocation5 + $0x1380] sm:$0xff]
    %v744 = vld [vmem:[#allocation5 + $0x1388] sm:$0xff]
    %v745 = vld [vmem:[#allocation5 + $0x1390] sm:$0xff]
    %v746 = vld [vmem:[#allocation5 + $0x1398] sm:$0xff]
    %v747 = vld [vmem:[#allocation5 + $0x13a0] sm:$0xff]
    %v748 = vld [vmem:[#allocation5 + $0x13a8] sm:$0xff]
    %v749 = vld [vmem:[#allocation5 + $0x13b0] sm:$0xff]
    %v750 = vld [vmem:[#allocation5 + $0x13b8] sm:$0xff]
    %v751 = vld [vmem:[#allocation5 + $0x13c0] sm:$0xff]
    %v752 = vld [vmem:[#allocation5 + $0x13c8] sm:$0xff]
    %v753 = vld [vmem:[#allocation5 + $0x13d0] sm:$0xff]
    %v754 = vld [vmem:[#allocation5 + $0x13d8] sm:$0xff]
    %v755 = vld [vmem:[#allocation5 + $0x13e0] sm:$0xff]
    %v756 = vld [vmem:[#allocation5 + $0x13e8] sm:$0xff]
    %v757 = vld [vmem:[#allocation5 + $0x13f0] sm:$0xff]
    %v758 = vld [vmem:[#allocation5 + $0x13f8] sm:$0xff]
    %v759 = vld [vmem:[#allocation5 + $0x1400] sm:$0xff]
    %v760 = vld [vmem:[#allocation5 + $0x1408] sm:$0xff]
    %v761 = vld [vmem:[#allocation5 + $0x1410] sm:$0xff]
    %v762 = vld [vmem:[#allocation5 + $0x1418] sm:$0xff]
    %v763 = vld [vmem:[#allocation5 + $0x1420] sm:$0xff]
    %v764 = vld [vmem:[#allocation5 + $0x1428] sm:$0xff]
    %v765 = vld [vmem:[#allocation5 + $0x1430] sm:$0xff]
    %v766 = vld [vmem:[#allocation5 + $0x1438] sm:$0xff]
    %v767 = vld [vmem:[#allocation5 + $0x1440] sm:$0xff]
    %v768 = vld [vmem:[#allocation5 + $0x1448] sm:$0xff]
    %v769 = vld [vmem:[#allocation5 + $0x1450] sm:$0xff]
    %v770 = vld [vmem:[#allocation5 + $0x1458] sm:$0xff]
    %v771 = vld [vmem:[#allocation5 + $0x1460] sm:$0xff]
    %v772 = vld [vmem:[#allocation5 + $0x1468] sm:$0xff]
    %v773 = vld [vmem:[#allocation5 + $0x1470] sm:$0xff]
    %v774 = vld [vmem:[#allocation5 + $0x1478] sm:$0xff]
    %v775 = vld [vmem:[#allocation5 + $0x1480] sm:$0xff]
    %v776 = vld [vmem:[#allocation5 + $0x1488] sm:$0xff]
    %v777 = vld [vmem:[#allocation5 + $0x1490] sm:$0xff]
    %v778 = vld [vmem:[#allocation5 + $0x1498] sm:$0xff]
    %v779 = vld [vmem:[#allocation5 + $0x14a0] sm:$0xff]
    %v780 = vld [vmem:[#allocation5 + $0x14a8] sm:$0xff]
    %v781 = vld [vmem:[#allocation5 + $0x14b0] sm:$0xff]
    %v782 = vld [vmem:[#allocation5 + $0x14b8] sm:$0xff]
    %v783 = vld [vmem:[#allocation5 + $0x14c0] sm:$0xff]
    %v784 = vld [vmem:[#allocation5 + $0x14c8] sm:$0xff]
    %v785 = vld [vmem:[#allocation5 + $0x14d0] sm:$0xff]
    %v786 = vld [vmem:[#allocation5 + $0x14d8] sm:$0xff]
    %v787 = vld [vmem:[#allocation5 + $0x14e0] sm:$0xff]
    %v788 = vld [vmem:[#allocation5 + $0x14e8] sm:$0xff]
    %v789 = vld [vmem:[#allocation5 + $0x14f0] sm:$0xff]
    %v790 = vld [vmem:[#allocation5 + $0x14f8] sm:$0xff]
    %v791 = vld [vmem:[#allocation5 + $0x1500] sm:$0xff]
    %v792 = vld [vmem:[#allocation5 + $0x1508] sm:$0xff]
    %v793 = vld [vmem:[#allocation5 + $0x1510] sm:$0xff]
    %v794 = vld [vmem:[#allocation5 + $0x1518] sm:$0xff]
    %v795 = vld [vmem:[#allocation5 + $0x1520] sm:$0xff]
    %v796 = vld [vmem:[#allocation5 + $0x1528] sm:$0xff]
    %v797 = vld [vmem:[#allocation5 + $0x1530] sm:$0xff]
    %v798 = vld [vmem:[#allocation5 + $0x1538] sm:$0xff]
    %v799 = vld [vmem:[#allocation5 + $0x1540] sm:$0xff]
    %v800 = vld [vmem:[#allocation5 + $0x1548] sm:$0xff]
    %v801 = vld [vmem:[#allocation5 + $0x1550] sm:$0xff]
    %v802 = vld [vmem:[#allocation5 + $0x1558] sm:$0xff]
    %v803 = vld [vmem:[#allocation5 + $0x1560] sm:$0xff]
    %v804 = vld [vmem:[#allocation5 + $0x1568] sm:$0xff]
    %v805 = vld [vmem:[#allocation5 + $0x1570] sm:$0xff]
    %v806 = vld [vmem:[#allocation5 + $0x1578] sm:$0xff]
    %v807 = vld [vmem:[#allocation5 + $0x1580] sm:$0xff]
    %v808 = vld [vmem:[#allocation5 + $0x1588] sm:$0xff]
    %v809 = vld [vmem:[#allocation5 + $0x1590] sm:$0xff]
    %v810 = vld [vmem:[#allocation5 + $0x1598] sm:$0xff]
    %v811 = vld [vmem:[#allocation5 + $0x15a0] sm:$0xff]
    %v812 = vld [vmem:[#allocation5 + $0x15a8] sm:$0xff]
    %v813 = vld [vmem:[#allocation5 + $0x15b0] sm:$0xff]
    %v814 = vld [vmem:[#allocation5 + $0x15b8] sm:$0xff]
    %v815 = vld [vmem:[#allocation5 + $0x15c0] sm:$0xff]
    %v816 = vld [vmem:[#allocation5 + $0x15c8] sm:$0xff]
    %v817 = vld [vmem:[#allocation5 + $0x15d0] sm:$0xff]
    %v818 = vld [vmem:[#allocation5 + $0x15d8] sm:$0xff]
    %v819 = vld [vmem:[#allocation5 + $0x15e0] sm:$0xff]
    %v820 = vld [vmem:[#allocation5 + $0x15e8] sm:$0xff]
    %v821 = vld [vmem:[#allocation5 + $0x15f0] sm:$0xff]
    %v822 = vld [vmem:[#allocation5 + $0x15f8] sm:$0xff]
    %v823 = vld [vmem:[#allocation5 + $0x1600] sm:$0xff]
    %v824 = vld [vmem:[#allocation5 + $0x1608] sm:$0xff]
    %v825 = vld [vmem:[#allocation5 + $0x1610] sm:$0xff]
    %v826 = vld [vmem:[#allocation5 + $0x1618] sm:$0xff]
    %v827 = vld [vmem:[#allocation5 + $0x1620] sm:$0xff]
    %v828 = vld [vmem:[#allocation5 + $0x1628] sm:$0xff]
    %v829 = vld [vmem:[#allocation5 + $0x1630] sm:$0xff]
    %v830 = vld [vmem:[#allocation5 + $0x1638] sm:$0xff]
    %v831 = vld [vmem:[#allocation5 + $0x1640] sm:$0xff]
    %v832 = vld [vmem:[#allocation5 + $0x1648] sm:$0xff]
    %v833 = vld [vmem:[#allocation5 + $0x1650] sm:$0xff]
    %v834 = vld [vmem:[#allocation5 + $0x1658] sm:$0xff]
    %v835 = vld [vmem:[#allocation5 + $0x1660] sm:$0xff]
    %v836 = vld [vmem:[#allocation5 + $0x1668] sm:$0xff]
    %v837 = vld [vmem:[#allocation5 + $0x1670] sm:$0xff]
    %v838 = vld [vmem:[#allocation5 + $0x1678] sm:$0xff]
    %v839 = vld [vmem:[#allocation5 + $0x1680] sm:$0xff]
    %v840 = vld [vmem:[#allocation5 + $0x1688] sm:$0xff]
    %v841 = vld [vmem:[#allocation5 + $0x1690] sm:$0xff]
    %v842 = vld [vmem:[#allocation5 + $0x1698] sm:$0xff]
    %v843 = vld [vmem:[#allocation5 + $0x16a0] sm:$0xff]
    %v844 = vld [vmem:[#allocation5 + $0x16a8] sm:$0xff]
    %v845 = vld [vmem:[#allocation5 + $0x16b0] sm:$0xff]
    %v846 = vld [vmem:[#allocation5 + $0x16b8] sm:$0xff]
    %v847 = vld [vmem:[#allocation5 + $0x16c0] sm:$0xff]
    %v848 = vld [vmem:[#allocation5 + $0x16c8] sm:$0xff]
    %v849 = vld [vmem:[#allocation5 + $0x16d0] sm:$0xff]
    %v850 = vld [vmem:[#allocation5 + $0x16d8] sm:$0xff]
    %v851 = vld [vmem:[#allocation5 + $0x16e0] sm:$0xff]
    %v852 = vld [vmem:[#allocation5 + $0x16e8] sm:$0xff]
    %v853 = vld [vmem:[#allocation5 + $0x16f0] sm:$0xff]
    %v854 = vld [vmem:[#allocation5 + $0x16f8] sm:$0xff]
    %v855 = vld [vmem:[#allocation5 + $0x1700] sm:$0xff]
    %v856 = vld [vmem:[#allocation5 + $0x1708] sm:$0xff]
    %v857 = vld [vmem:[#allocation5 + $0x1710] sm:$0xff]
    %v858 = vld [vmem:[#allocation5 + $0x1718] sm:$0xff]
    %v859 = vld [vmem:[#allocation5 + $0x1720] sm:$0xff]
    %v860 = vld [vmem:[#allocation5 + $0x1728] sm:$0xff]
    %v861 = vld [vmem:[#allocation5 + $0x1730] sm:$0xff]
    %v862 = vld [vmem:[#allocation5 + $0x1738] sm:$0xff]
    %v863 = vld [vmem:[#allocation5 + $0x1740] sm:$0xff]
    %v864 = vld [vmem:[#allocation5 + $0x1748] sm:$0xff]
    %v865 = vld [vmem:[#allocation5 + $0x1750] sm:$0xff]
    %v866 = vld [vmem:[#allocation5 + $0x1758] sm:$0xff]
    %v867 = vld [vmem:[#allocation5 + $0x1760] sm:$0xff]
    %v868 = vld [vmem:[#allocation5 + $0x1768] sm:$0xff]
    %v869 = vld [vmem:[#allocation5 + $0x1770] sm:$0xff]
    %v870 = vld [vmem:[#allocation5 + $0x1778] sm:$0xff]
    %v871 = vld [vmem:[#allocation5 + $0x1780] sm:$0xff]
    %v872 = vld [vmem:[#allocation5 + $0x1788] sm:$0xff]
    %v873 = vld [vmem:[#allocation5 + $0x1790] sm:$0xff]
    %v874 = vld [vmem:[#allocation5 + $0x1798] sm:$0xff]
    %v875 = vld [vmem:[#allocation5 + $0x17a0] sm:$0xff]
    %v876 = vld [vmem:[#allocation5 + $0x17a8] sm:$0xff]
    %v877 = vld [vmem:[#allocation5 + $0x17b0] sm:$0xff]
    %v878 = vld [vmem:[#allocation5 + $0x17b8] sm:$0xff]
    %v879 = vld [vmem:[#allocation5 + $0x17c0] sm:$0xff]
    %v880 = vld [vmem:[#allocation5 + $0x17c8] sm:$0xff]
    %v881 = vld [vmem:[#allocation5 + $0x17d0] sm:$0xff]
    %v882 = vld [vmem:[#allocation5 + $0x17d8] sm:$0xff]
    %v883 = vld [vmem:[#allocation5 + $0x17e0] sm:$0xff]
    %v884 = vld [vmem:[#allocation5 + $0x17e8] sm:$0xff]
    %v885 = vld [vmem:[#allocation5 + $0x17f0] sm:$0xff]
    %v886 = vld [vmem:[#allocation5 + $0x17f8] sm:$0xff]
    %v887 = vld [vmem:[#allocation7] sm:$0xf]
    %v889 = vperm.slane %v887, 0
    %v890 = vperm.slane %v887, 1
    %v891 = vperm.slane %v887, 2
    %v892 = vperm.slane %v887, 3
    %897 = vmatpush.msra.mxu0 %v179
    %898 = vmatpush.msra.mxu0 %v175
    %899 = vmatpush.msra.mxu0 %v171
    %900 = vmatpush.msra.mxu0 %v167
    %901 = vmatpush.msra.mxu0 %v163
    %902 = vmatpush.msra.mxu0 %v159
    %903 = vmatpush.msra.mxu0 %v155
    %904 = vmatpush.msra.mxu0 %v151
    %905 = vmatpush.msra.mxu0 %v147
    %906 = vmatpush.msra.mxu0 %v143
    %907 = vmatpush.msra.mxu0 %v139
    %908 = vmatpush.msra.mxu0 %v135
    %909 = vmatpush.msra.mxu0 %v131
    %910 = vmatpush.msra.mxu0 %v127
    %911 = vmatpush.msra.mxu0 %v123
    %912 = vmatpush.msra.mxu0 %v119
    %913 = vmatmul.f32.gmra.mxu0 %v95
    %v914 = vpop.f32.mrf.mxu0
    %v915 = vadd.f32 %v889, %v914
    %916 = vmatmul.f32.gmra.mxu0 %v107
    %v917 = vpop.f32.mrf.mxu0
    %v918 = vadd.f32 %v889, %v917
    %919 = vdwg.mxu0
    %920 = vmatpush.msra.mxu0 %v243
    %921 = vmatpush.msra.mxu0 %v239
    %922 = vmatpush.msra.mxu0 %v235
    %923 = vmatpush.msra.mxu0 %v231
    %924 = vmatpush.msra.mxu0 %v227
    %925 = vmatpush.msra.mxu0 %v223
    %926 = vmatpush.msra.mxu0 %v219
    %927 = vmatpush.msra.mxu0 %v215
    %928 = vmatpush.msra.mxu0 %v211
    %929 = vmatpush.msra.mxu0 %v207
    %930 = vmatpush.msra.mxu0 %v203
    %931 = vmatpush.msra.mxu0 %v199
    %932 = vmatpush.msra.mxu0 %v195
    %933 = vmatpush.msra.mxu0 %v191
    %934 = vmatpush.msra.mxu0 %v187
    %935 = vmatpush.msra.mxu0 %v183
    %936 = vmatmul.f32.gmra.mxu0 %v96
    %v937 = vpop.f32.mrf.mxu0
    %v938 = vadd.f32 %v915, %v937
    %939 = vmatmul.f32.gmra.mxu0 %v108
    %v940 = vpop.f32.mrf.mxu0
    %v941 = vadd.f32 %v918, %v940
    %942 = vdwg.mxu0
    %943 = vmatpush.msra.mxu0 %v307
    %944 = vmatpush.msra.mxu0 %v303
    %945 = vmatpush.msra.mxu0 %v299
    %946 = vmatpush.msra.mxu0 %v295
    %947 = vmatpush.msra.mxu0 %v291
    %948 = vmatpush.msra.mxu0 %v287
    %949 = vmatpush.msra.mxu0 %v283
    %950 = vmatpush.msra.mxu0 %v279
    %951 = vmatpush.msra.mxu0 %v275
    %952 = vmatpush.msra.mxu0 %v271
    %953 = vmatpush.msra.mxu0 %v267
    %954 = vmatpush.msra.mxu0 %v263
    %955 = vmatpush.msra.mxu0 %v259
    %956 = vmatpush.msra.mxu0 %v255
    %957 = vmatpush.msra.mxu0 %v251
    %958 = vmatpush.msra.mxu0 %v247
    %959 = vmatmul.f32.gmra.mxu0 %v97
    %v960 = vpop.f32.mrf.mxu0
    %v961 = vadd.f32 %v938, %v960
    %962 = vmatmul.f32.gmra.mxu0 %v109
    %v963 = vpop.f32.mrf.mxu0
    %v964 = vadd.f32 %v941, %v963
    %965 = vdwg.mxu0
    %966 = vmatpush.msra.mxu0 %v371
    %967 = vmatpush.msra.mxu0 %v367
    %968 = vmatpush.msra.mxu0 %v363
    %969 = vmatpush.msra.mxu0 %v359
    %970 = vmatpush.msra.mxu0 %v355
    %971 = vmatpush.msra.mxu0 %v351
    %972 = vmatpush.msra.mxu0 %v347
    %973 = vmatpush.msra.mxu0 %v343
    %974 = vmatpush.msra.mxu0 %v339
    %975 = vmatpush.msra.mxu0 %v335
    %976 = vmatpush.msra.mxu0 %v331
    %977 = vmatpush.msra.mxu0 %v327
    %978 = vmatpush.msra.mxu0 %v323
    %979 = vmatpush.msra.mxu0 %v319
    %980 = vmatpush.msra.mxu0 %v315
    %981 = vmatpush.msra.mxu0 %v311
    %982 = vmatmul.f32.gmra.mxu0 %v98
    %v983 = vpop.f32.mrf.mxu0
    %v984 = vadd.f32 %v961, %v983
    %985 = vmatmul.f32.gmra.mxu0 %v110
    %v986 = vpop.f32.mrf.mxu0
    %v987 = vadd.f32 %v964, %v986
    %988 = vdwg.mxu0
    %989 = vmatpush.msra.mxu0 %v435
    %990 = vmatpush.msra.mxu0 %v431
    %991 = vmatpush.msra.mxu0 %v427
    %992 = vmatpush.msra.mxu0 %v423
    %993 = vmatpush.msra.mxu0 %v419
    %994 = vmatpush.msra.mxu0 %v415
    %995 = vmatpush.msra.mxu0 %v411
    %996 = vmatpush.msra.mxu0 %v407
    %997 = vmatpush.msra.mxu0 %v403
    %998 = vmatpush.msra.mxu0 %v399
    %999 = vmatpush.msra.mxu0 %v395
    %1000 = vmatpush.msra.mxu0 %v391
    %1001 = vmatpush.msra.mxu0 %v387
    %1002 = vmatpush.msra.mxu0 %v383
    %1003 = vmatpush.msra.mxu0 %v379
    %1004 = vmatpush.msra.mxu0 %v375
    %1005 = vmatmul.f32.gmra.mxu0 %v99
    %v1006 = vpop.f32.mrf.mxu0
    %v1007 = vadd.f32 %v984, %v1006
    %1008 = vmatmul.f32.gmra.mxu0 %v111
    %v1009 = vpop.f32.mrf.mxu0
    %v1010 = vadd.f32 %v987, %v1009
    %1011 = vdwg.mxu0
    %1012 = vmatpush.msra.mxu0 %v499
    %1013 = vmatpush.msra.mxu0 %v495
    %1014 = vmatpush.msra.mxu0 %v491
    %1015 = vmatpush.msra.mxu0 %v487
    %1016 = vmatpush.msra.mxu0 %v483
    %1017 = vmatpush.msra.mxu0 %v479
    %1018 = vmatpush.msra.mxu0 %v475
    %1019 = vmatpush.msra.mxu0 %v471
    %1020 = vmatpush.msra.mxu0 %v467
    %1021 = vmatpush.msra.mxu0 %v463
    %1022 = vmatpush.msra.mxu0 %v459
    %1023 = vmatpush.msra.mxu0 %v455
    %1024 = vmatpush.msra.mxu0 %v451
    %1025 = vmatpush.msra.mxu0 %v447
    %1026 = vmatpush.msra.mxu0 %v443
    %1027 = vmatpush.msra.mxu0 %v439
    %1028 = vmatmul.f32.gmra.mxu0 %v100
    %v1029 = vpop.f32.mrf.mxu0
    %v1030 = vadd.f32 %v1007, %v1029
    %1031 = vmatmul.f32.gmra.mxu0 %v112
    %v1032 = vpop.f32.mrf.mxu0
    %v1033 = vadd.f32 %v1010, %v1032
    %1034 = vdwg.mxu0
    %1035 = vmatpush.msra.mxu0 %v563
    %1036 = vmatpush.msra.mxu0 %v559
    %1037 = vmatpush.msra.mxu0 %v555
    %1038 = vmatpush.msra.mxu0 %v551
    %1039 = vmatpush.msra.mxu0 %v547
    %1040 = vmatpush.msra.mxu0 %v543
    %1041 = vmatpush.msra.mxu0 %v539
    %1042 = vmatpush.msra.mxu0 %v535
    %1043 = vmatpush.msra.mxu0 %v531
    %1044 = vmatpush.msra.mxu0 %v527
    %1045 = vmatpush.msra.mxu0 %v523
    %1046 = vmatpush.msra.mxu0 %v519
    %1047 = vmatpush.msra.mxu0 %v515
    %1048 = vmatpush.msra.mxu0 %v511
    %1049 = vmatpush.msra.mxu0 %v507
    %1050 = vmatpush.msra.mxu0 %v503
    %1051 = vmatmul.f32.gmra.mxu0 %v101
    %v1052 = vpop.f32.mrf.mxu0
    %v1053 = vadd.f32 %v1030, %v1052
    %1054 = vmatmul.f32.gmra.mxu0 %v113
    %v1055 = vpop.f32.mrf.mxu0
    %v1056 = vadd.f32 %v1033, %v1055
    %1057 = vdwg.mxu0
    %1058 = vmatpush.msra.mxu0 %v627
    %1059 = vmatpush.msra.mxu0 %v623
    %1060 = vmatpush.msra.mxu0 %v619
    %1061 = vmatpush.msra.mxu0 %v615
    %1062 = vmatpush.msra.mxu0 %v611
    %1063 = vmatpush.msra.mxu0 %v607
    %1064 = vmatpush.msra.mxu0 %v603
    %1065 = vmatpush.msra.mxu0 %v599
    %1066 = vmatpush.msra.mxu0 %v595
    %1067 = vmatpush.msra.mxu0 %v591
    %1068 = vmatpush.msra.mxu0 %v587
    %1069 = vmatpush.msra.mxu0 %v583
    %1070 = vmatpush.msra.mxu0 %v579
    %1071 = vmatpush.msra.mxu0 %v575
    %1072 = vmatpush.msra.mxu0 %v571
    %1073 = vmatpush.msra.mxu0 %v567
    %1074 = vmatmul.f32.gmra.mxu0 %v102
    %v1075 = vpop.f32.mrf.mxu0
    %v1076 = vadd.f32 %v1053, %v1075
    %1077 = vmatmul.f32.gmra.mxu0 %v114
    %v1078 = vpop.f32.mrf.mxu0
    %v1079 = vadd.f32 %v1056, %v1078
    %1080 = vdwg.mxu0
    %1081 = vmatpush.msra.mxu0 %v691
    %1082 = vmatpush.msra.mxu0 %v687
    %1083 = vmatpush.msra.mxu0 %v683
    %1084 = vmatpush.msra.mxu0 %v679
    %1085 = vmatpush.msra.mxu0 %v675
    %1086 = vmatpush.msra.mxu0 %v671
    %1087 = vmatpush.msra.mxu0 %v667
    %1088 = vmatpush.msra.mxu0 %v663
    %1089 = vmatpush.msra.mxu0 %v659
    %1090 = vmatpush.msra.mxu0 %v655
    %1091 = vmatpush.msra.mxu0 %v651
    %1092 = vmatpush.msra.mxu0 %v647
    %1093 = vmatpush.msra.mxu0 %v643
    %1094 = vmatpush.msra.mxu0 %v639
    %1095 = vmatpush.msra.mxu0 %v635
    %1096 = vmatpush.msra.mxu0 %v631
    %1097 = vmatmul.f32.gmra.mxu0 %v103
    %v1098 = vpop.f32.mrf.mxu0
    %v1099 = vadd.f32 %v1076, %v1098
    %1100 = vmatmul.f32.gmra.mxu0 %v115
    %v1101 = vpop.f32.mrf.mxu0
    %v1102 = vadd.f32 %v1079, %v1101
    %1103 = vdwg.mxu0
    %1104 = vmatpush.msra.mxu0 %v755
    %1105 = vmatpush.msra.mxu0 %v751
    %1106 = vmatpush.msra.mxu0 %v747
    %1107 = vmatpush.msra.mxu0 %v743
    %1108 = vmatpush.msra.mxu0 %v739
    %1109 = vmatpush.msra.mxu0 %v735
    %1110 = vmatpush.msra.mxu0 %v731
    %1111 = vmatpush.msra.mxu0 %v727
    %1112 = vmatpush.msra.mxu0 %v723
    %1113 = vmatpush.msra.mxu0 %v719
    %1114 = vmatpush.msra.mxu0 %v715
    %1115 = vmatpush.msra.mxu0 %v711
    %1116 = vmatpush.msra.mxu0 %v707
    %1117 = vmatpush.msra.mxu0 %v703
    %1118 = vmatpush.msra.mxu0 %v699
    %1119 = vmatpush.msra.mxu0 %v695
    %1120 = vmatmul.f32.gmra.mxu0 %v104
    %v1121 = vpop.f32.mrf.mxu0
    %v1122 = vadd.f32 %v1099, %v1121
    %1123 = vmatmul.f32.gmra.mxu0 %v116
    %v1124 = vpop.f32.mrf.mxu0
    %v1125 = vadd.f32 %v1102, %v1124
    %1126 = vdwg.mxu0
    %1127 = vmatpush.msra.mxu0 %v819
    %1128 = vmatpush.msra.mxu0 %v815
    %1129 = vmatpush.msra.mxu0 %v811
    %1130 = vmatpush.msra.mxu0 %v807
    %1131 = vmatpush.msra.mxu0 %v803
    %1132 = vmatpush.msra.mxu0 %v799
    %1133 = vmatpush.msra.mxu0 %v795
    %1134 = vmatpush.msra.mxu0 %v791
    %1135 = vmatpush.msra.mxu0 %v787
    %1136 = vmatpush.msra.mxu0 %v783
    %1137 = vmatpush.msra.mxu0 %v779
    %1138 = vmatpush.msra.mxu0 %v775
    %1139 = vmatpush.msra.mxu0 %v771
    %1140 = vmatpush.msra.mxu0 %v767
    %1141 = vmatpush.msra.mxu0 %v763
    %1142 = vmatpush.msra.mxu0 %v759
    %1143 = vmatmul.f32.gmra.mxu0 %v105
    %v1144 = vpop.f32.mrf.mxu0
    %v1145 = vadd.f32 %v1122, %v1144
    %1146 = vmatmul.f32.gmra.mxu0 %v117
    %v1147 = vpop.f32.mrf.mxu0
    %v1148 = vadd.f32 %v1125, %v1147
    %1149 = vdwg.mxu0
    %1150 = vmatpush.msra.mxu0 %v883
    %1151 = vmatpush.msra.mxu0 %v879
    %1152 = vmatpush.msra.mxu0 %v875
    %1153 = vmatpush.msra.mxu0 %v871
    %1154 = vmatpush.msra.mxu0 %v867
    %1155 = vmatpush.msra.mxu0 %v863
    %1156 = vmatpush.msra.mxu0 %v859
    %1157 = vmatpush.msra.mxu0 %v855
    %1158 = vmatpush.msra.mxu0 %v851
    %1159 = vmatpush.msra.mxu0 %v847
    %1160 = vmatpush.msra.mxu0 %v843
    %1161 = vmatpush.msra.mxu0 %v839
    %1162 = vmatpush.msra.mxu0 %v835
    %1163 = vmatpush.msra.mxu0 %v831
    %1164 = vmatpush.msra.mxu0 %v827
    %1165 = vmatpush.msra.mxu0 %v823
    %1166 = vmatmul.f32.gmra.mxu0 %v106
    %v1167 = vpop.f32.mrf.mxu0
    %v1168 = vadd.f32 %v1145, %v1167
    %1169 = vmatmul.f32.gmra.mxu0 %v118
    %v1170 = vpop.f32.mrf.mxu0
    %v1171 = vadd.f32 %v1148, %v1170
    %1172 = vdwg.mxu0
    %1173 = vmatpush.msra.mxu0 %v180
    %1174 = vmatpush.msra.mxu0 %v176
    %1175 = vmatpush.msra.mxu0 %v172
    %1176 = vmatpush.msra.mxu0 %v168
    %1177 = vmatpush.msra.mxu0 %v164
    %1178 = vmatpush.msra.mxu0 %v160
    %1179 = vmatpush.msra.mxu0 %v156
    %1180 = vmatpush.msra.mxu0 %v152
    %1181 = vmatpush.msra.mxu0 %v148
    %1182 = vmatpush.msra.mxu0 %v144
    %1183 = vmatpush.msra.mxu0 %v140
    %1184 = vmatpush.msra.mxu0 %v136
    %1185 = vmatpush.msra.mxu0 %v132
    %1186 = vmatpush.msra.mxu0 %v128
    %1187 = vmatpush.msra.mxu0 %v124
    %1188 = vmatpush.msra.mxu0 %v120
    %1189 = vmatmul.f32.gmra.mxu0 %v95
    %v1190 = vpop.f32.mrf.mxu0
    %v1191 = vadd.f32 %v890, %v1190
    %1192 = vmatmul.f32.gmra.mxu0 %v107
    %v1193 = vpop.f32.mrf.mxu0
    %v1194 = vadd.f32 %v890, %v1193
    %1195 = vdwg.mxu0
    %1196 = vmatpush.msra.mxu0 %v244
    %1197 = vmatpush.msra.mxu0 %v240
    %1198 = vmatpush.msra.mxu0 %v236
    %1199 = vmatpush.msra.mxu0 %v232
    %1200 = vmatpush.msra.mxu0 %v228
    %1201 = vmatpush.msra.mxu0 %v224
    %1202 = vmatpush.msra.mxu0 %v220
    %1203 = vmatpush.msra.mxu0 %v216
    %1204 = vmatpush.msra.mxu0 %v212
    %1205 = vmatpush.msra.mxu0 %v208
    %1206 = vmatpush.msra.mxu0 %v204
    %1207 = vmatpush.msra.mxu0 %v200
    %1208 = vmatpush.msra.mxu0 %v196
    %1209 = vmatpush.msra.mxu0 %v192
    %1210 = vmatpush.msra.mxu0 %v188
    %1211 = vmatpush.msra.mxu0 %v184
    %1212 = vmatmul.f32.gmra.mxu0 %v96
    %v1213 = vpop.f32.mrf.mxu0
    %v1214 = vadd.f32 %v1191, %v1213
    %1215 = vmatmul.f32.gmra.mxu0 %v108
    %v1216 = vpop.f32.mrf.mxu0
    %v1217 = vadd.f32 %v1194, %v1216
    %1218 = vdwg.mxu0
    %1219 = vmatpush.msra.mxu0 %v308
    %1220 = vmatpush.msra.mxu0 %v304
    %1221 = vmatpush.msra.mxu0 %v300
    %1222 = vmatpush.msra.mxu0 %v296
    %1223 = vmatpush.msra.mxu0 %v292
    %1224 = vmatpush.msra.mxu0 %v288
    %1225 = vmatpush.msra.mxu0 %v284
    %1226 = vmatpush.msra.mxu0 %v280
    %1227 = vmatpush.msra.mxu0 %v276
    %1228 = vmatpush.msra.mxu0 %v272
    %1229 = vmatpush.msra.mxu0 %v268
    %1230 = vmatpush.msra.mxu0 %v264
    %1231 = vmatpush.msra.mxu0 %v260
    %1232 = vmatpush.msra.mxu0 %v256
    %1233 = vmatpush.msra.mxu0 %v252
    %1234 = vmatpush.msra.mxu0 %v248
    %1235 = vmatmul.f32.gmra.mxu0 %v97
    %v1236 = vpop.f32.mrf.mxu0
    %v1237 = vadd.f32 %v1214, %v1236
    %1238 = vmatmul.f32.gmra.mxu0 %v109
    %v1239 = vpop.f32.mrf.mxu0
    %v1240 = vadd.f32 %v1217, %v1239
    %1241 = vdwg.mxu0
    %1242 = vmatpush.msra.mxu0 %v372
    %1243 = vmatpush.msra.mxu0 %v368
    %1244 = vmatpush.msra.mxu0 %v364
    %1245 = vmatpush.msra.mxu0 %v360
    %1246 = vmatpush.msra.mxu0 %v356
    %1247 = vmatpush.msra.mxu0 %v352
    %1248 = vmatpush.msra.mxu0 %v348
    %1249 = vmatpush.msra.mxu0 %v344
    %1250 = vmatpush.msra.mxu0 %v340
    %1251 = vmatpush.msra.mxu0 %v336
    %1252 = vmatpush.msra.mxu0 %v332
    %1253 = vmatpush.msra.mxu0 %v328
    %1254 = vmatpush.msra.mxu0 %v324
    %1255 = vmatpush.msra.mxu0 %v320
    %1256 = vmatpush.msra.mxu0 %v316
    %1257 = vmatpush.msra.mxu0 %v312
    %1258 = vmatmul.f32.gmra.mxu0 %v98
    %v1259 = vpop.f32.mrf.mxu0
    %v1260 = vadd.f32 %v1237, %v1259
    %1261 = vmatmul.f32.gmra.mxu0 %v110
    %v1262 = vpop.f32.mrf.mxu0
    %v1263 = vadd.f32 %v1240, %v1262
    %1264 = vdwg.mxu0
    %1265 = vmatpush.msra.mxu0 %v436
    %1266 = vmatpush.msra.mxu0 %v432
    %1267 = vmatpush.msra.mxu0 %v428
    %1268 = vmatpush.msra.mxu0 %v424
    %1269 = vmatpush.msra.mxu0 %v420
    %1270 = vmatpush.msra.mxu0 %v416
    %1271 = vmatpush.msra.mxu0 %v412
    %1272 = vmatpush.msra.mxu0 %v408
    %1273 = vmatpush.msra.mxu0 %v404
    %1274 = vmatpush.msra.mxu0 %v400
    %1275 = vmatpush.msra.mxu0 %v396
    %1276 = vmatpush.msra.mxu0 %v392
    %1277 = vmatpush.msra.mxu0 %v388
    %1278 = vmatpush.msra.mxu0 %v384
    %1279 = vmatpush.msra.mxu0 %v380
    %1280 = vmatpush.msra.mxu0 %v376
    %1281 = vmatmul.f32.gmra.mxu0 %v99
    %v1282 = vpop.f32.mrf.mxu0
    %v1283 = vadd.f32 %v1260, %v1282
    %1284 = vmatmul.f32.gmra.mxu0 %v111
    %v1285 = vpop.f32.mrf.mxu0
    %v1286 = vadd.f32 %v1263, %v1285
    %1287 = vdwg.mxu0
    %1288 = vmatpush.msra.mxu0 %v500
    %1289 = vmatpush.msra.mxu0 %v496
    %1290 = vmatpush.msra.mxu0 %v492
    %1291 = vmatpush.msra.mxu0 %v488
    %1292 = vmatpush.msra.mxu0 %v484
    %1293 = vmatpush.msra.mxu0 %v480
    %1294 = vmatpush.msra.mxu0 %v476
    %1295 = vmatpush.msra.mxu0 %v472
    %1296 = vmatpush.msra.mxu0 %v468
    %1297 = vmatpush.msra.mxu0 %v464
    %1298 = vmatpush.msra.mxu0 %v460
    %1299 = vmatpush.msra.mxu0 %v456
    %1300 = vmatpush.msra.mxu0 %v452
    %1301 = vmatpush.msra.mxu0 %v448
    %1302 = vmatpush.msra.mxu0 %v444
    %1303 = vmatpush.msra.mxu0 %v440
    %1304 = vmatmul.f32.gmra.mxu0 %v100
    %v1305 = vpop.f32.mrf.mxu0
    %v1306 = vadd.f32 %v1283, %v1305
    %1307 = vmatmul.f32.gmra.mxu0 %v112
    %v1308 = vpop.f32.mrf.mxu0
    %v1309 = vadd.f32 %v1286, %v1308
    %1310 = vdwg.mxu0
    %1311 = vmatpush.msra.mxu0 %v564
    %1312 = vmatpush.msra.mxu0 %v560
    %1313 = vmatpush.msra.mxu0 %v556
    %1314 = vmatpush.msra.mxu0 %v552
    %1315 = vmatpush.msra.mxu0 %v548
    %1316 = vmatpush.msra.mxu0 %v544
    %1317 = vmatpush.msra.mxu0 %v540
    %1318 = vmatpush.msra.mxu0 %v536
    %1319 = vmatpush.msra.mxu0 %v532
    %1320 = vmatpush.msra.mxu0 %v528
    %1321 = vmatpush.msra.mxu0 %v524
    %1322 = vmatpush.msra.mxu0 %v520
    %1323 = vmatpush.msra.mxu0 %v516
    %1324 = vmatpush.msra.mxu0 %v512
    %1325 = vmatpush.msra.mxu0 %v508
    %1326 = vmatpush.msra.mxu0 %v504
    %1327 = vmatmul.f32.gmra.mxu0 %v101
    %v1328 = vpop.f32.mrf.mxu0
    %v1329 = vadd.f32 %v1306, %v1328
    %1330 = vmatmul.f32.gmra.mxu0 %v113
    %v1331 = vpop.f32.mrf.mxu0
    %v1332 = vadd.f32 %v1309, %v1331
    %1333 = vdwg.mxu0
    %1334 = vmatpush.msra.mxu0 %v628
    %1335 = vmatpush.msra.mxu0 %v624
    %1336 = vmatpush.msra.mxu0 %v620
    %1337 = vmatpush.msra.mxu0 %v616
    %1338 = vmatpush.msra.mxu0 %v612
    %1339 = vmatpush.msra.mxu0 %v608
    %1340 = vmatpush.msra.mxu0 %v604
    %1341 = vmatpush.msra.mxu0 %v600
    %1342 = vmatpush.msra.mxu0 %v596
    %1343 = vmatpush.msra.mxu0 %v592
    %1344 = vmatpush.msra.mxu0 %v588
    %1345 = vmatpush.msra.mxu0 %v584
    %1346 = vmatpush.msra.mxu0 %v580
    %1347 = vmatpush.msra.mxu0 %v576
    %1348 = vmatpush.msra.mxu0 %v572
    %1349 = vmatpush.msra.mxu0 %v568
    %1350 = vmatmul.f32.gmra.mxu0 %v102
    %v1351 = vpop.f32.mrf.mxu0
    %v1352 = vadd.f32 %v1329, %v1351
    %1353 = vmatmul.f32.gmra.mxu0 %v114
    %v1354 = vpop.f32.mrf.mxu0
    %v1355 = vadd.f32 %v1332, %v1354
    %1356 = vdwg.mxu0
    %1357 = vmatpush.msra.mxu0 %v692
    %1358 = vmatpush.msra.mxu0 %v688
    %1359 = vmatpush.msra.mxu0 %v684
    %1360 = vmatpush.msra.mxu0 %v680
    %1361 = vmatpush.msra.mxu0 %v676
    %1362 = vmatpush.msra.mxu0 %v672
    %1363 = vmatpush.msra.mxu0 %v668
    %1364 = vmatpush.msra.mxu0 %v664
    %1365 = vmatpush.msra.mxu0 %v660
    %1366 = vmatpush.msra.mxu0 %v656
    %1367 = vmatpush.msra.mxu0 %v652
    %1368 = vmatpush.msra.mxu0 %v648
    %1369 = vmatpush.msra.mxu0 %v644
    %1370 = vmatpush.msra.mxu0 %v640
    %1371 = vmatpush.msra.mxu0 %v636
    %1372 = vmatpush.msra.mxu0 %v632
    %1373 = vmatmul.f32.gmra.mxu0 %v103
    %v1374 = vpop.f32.mrf.mxu0
    %v1375 = vadd.f32 %v1352, %v1374
    %1376 = vmatmul.f32.gmra.mxu0 %v115
    %v1377 = vpop.f32.mrf.mxu0
    %v1378 = vadd.f32 %v1355, %v1377
    %1379 = vdwg.mxu0
    %1380 = vmatpush.msra.mxu0 %v756
    %1381 = vmatpush.msra.mxu0 %v752
    %1382 = vmatpush.msra.mxu0 %v748
    %1383 = vmatpush.msra.mxu0 %v744
    %1384 = vmatpush.msra.mxu0 %v740
    %1385 = vmatpush.msra.mxu0 %v736
    %1386 = vmatpush.msra.mxu0 %v732
    %1387 = vmatpush.msra.mxu0 %v728
    %1388 = vmatpush.msra.mxu0 %v724
    %1389 = vmatpush.msra.mxu0 %v720
    %1390 = vmatpush.msra.mxu0 %v716
    %1391 = vmatpush.msra.mxu0 %v712
    %1392 = vmatpush.msra.mxu0 %v708
    %1393 = vmatpush.msra.mxu0 %v704
    %1394 = vmatpush.msra.mxu0 %v700
    %1395 = vmatpush.msra.mxu0 %v696
    %1396 = vmatmul.f32.gmra.mxu0 %v104
    %v1397 = vpop.f32.mrf.mxu0
    %v1398 = vadd.f32 %v1375, %v1397
    %1399 = vmatmul.f32.gmra.mxu0 %v116
    %v1400 = vpop.f32.mrf.mxu0
    %v1401 = vadd.f32 %v1378, %v1400
    %1402 = vdwg.mxu0
    %1403 = vmatpush.msra.mxu0 %v820
    %1404 = vmatpush.msra.mxu0 %v816
    %1405 = vmatpush.msra.mxu0 %v812
    %1406 = vmatpush.msra.mxu0 %v808
    %1407 = vmatpush.msra.mxu0 %v804
    %1408 = vmatpush.msra.mxu0 %v800
    %1409 = vmatpush.msra.mxu0 %v796
    %1410 = vmatpush.msra.mxu0 %v792
    %1411 = vmatpush.msra.mxu0 %v788
    %1412 = vmatpush.msra.mxu0 %v784
    %1413 = vmatpush.msra.mxu0 %v780
    %1414 = vmatpush.msra.mxu0 %v776
    %1415 = vmatpush.msra.mxu0 %v772
    %1416 = vmatpush.msra.mxu0 %v768
    %1417 = vmatpush.msra.mxu0 %v764
    %1418 = vmatpush.msra.mxu0 %v760
    %1419 = vmatmul.f32.gmra.mxu0 %v105
    %v1420 = vpop.f32.mrf.mxu0
    %v1421 = vadd.f32 %v1398, %v1420
    %1422 = vmatmul.f32.gmra.mxu0 %v117
    %v1423 = vpop.f32.mrf.mxu0
    %v1424 = vadd.f32 %v1401, %v1423
    %1425 = vdwg.mxu0
    %1426 = vmatpush.msra.mxu0 %v884
    %1427 = vmatpush.msra.mxu0 %v880
    %1428 = vmatpush.msra.mxu0 %v876
    %1429 = vmatpush.msra.mxu0 %v872
    %1430 = vmatpush.msra.mxu0 %v868
    %1431 = vmatpush.msra.mxu0 %v864
    %1432 = vmatpush.msra.mxu0 %v860
    %1433 = vmatpush.msra.mxu0 %v856
    %1434 = vmatpush.msra.mxu0 %v852
    %1435 = vmatpush.msra.mxu0 %v848
    %1436 = vmatpush.msra.mxu0 %v844
    %1437 = vmatpush.msra.mxu0 %v840
    %1438 = vmatpush.msra.mxu0 %v836
    %1439 = vmatpush.msra.mxu0 %v832
    %1440 = vmatpush.msra.mxu0 %v828
    %1441 = vmatpush.msra.mxu0 %v824
    %1442 = vmatmul.f32.gmra.mxu0 %v106
    %v1443 = vpop.f32.mrf.mxu0
    %v1444 = vadd.f32 %v1421, %v1443
    %1445 = vmatmul.f32.gmra.mxu0 %v118
    %v1446 = vpop.f32.mrf.mxu0
    %v1447 = vadd.f32 %v1424, %v1446
    %1448 = vdwg.mxu0
    %1449 = vmatpush.msra.mxu0 %v181
    %1450 = vmatpush.msra.mxu0 %v177
    %1451 = vmatpush.msra.mxu0 %v173
    %1452 = vmatpush.msra.mxu0 %v169
    %1453 = vmatpush.msra.mxu0 %v165
    %1454 = vmatpush.msra.mxu0 %v161
    %1455 = vmatpush.msra.mxu0 %v157
    %1456 = vmatpush.msra.mxu0 %v153
    %1457 = vmatpush.msra.mxu0 %v149
    %1458 = vmatpush.msra.mxu0 %v145
    %1459 = vmatpush.msra.mxu0 %v141
    %1460 = vmatpush.msra.mxu0 %v137
    %1461 = vmatpush.msra.mxu0 %v133
    %1462 = vmatpush.msra.mxu0 %v129
    %1463 = vmatpush.msra.mxu0 %v125
    %1464 = vmatpush.msra.mxu0 %v121
    %1465 = vmatmul.f32.gmra.mxu0 %v95
    %v1466 = vpop.f32.mrf.mxu0
    %v1467 = vadd.f32 %v891, %v1466
    %1468 = vmatmul.f32.gmra.mxu0 %v107
    %v1469 = vpop.f32.mrf.mxu0
    %v1470 = vadd.f32 %v891, %v1469
    %1471 = vdwg.mxu0
    %1472 = vmatpush.msra.mxu0 %v245
    %1473 = vmatpush.msra.mxu0 %v241
    %1474 = vmatpush.msra.mxu0 %v237
    %1475 = vmatpush.msra.mxu0 %v233
    %1476 = vmatpush.msra.mxu0 %v229
    %1477 = vmatpush.msra.mxu0 %v225
    %1478 = vmatpush.msra.mxu0 %v221
    %1479 = vmatpush.msra.mxu0 %v217
    %1480 = vmatpush.msra.mxu0 %v213
    %1481 = vmatpush.msra.mxu0 %v209
    %1482 = vmatpush.msra.mxu0 %v205
    %1483 = vmatpush.msra.mxu0 %v201
    %1484 = vmatpush.msra.mxu0 %v197
    %1485 = vmatpush.msra.mxu0 %v193
    %1486 = vmatpush.msra.mxu0 %v189
    %1487 = vmatpush.msra.mxu0 %v185
    %1488 = vmatmul.f32.gmra.mxu0 %v96
    %v1489 = vpop.f32.mrf.mxu0
    %v1490 = vadd.f32 %v1467, %v1489
    %1491 = vmatmul.f32.gmra.mxu0 %v108
    %v1492 = vpop.f32.mrf.mxu0
    %v1493 = vadd.f32 %v1470, %v1492
    %1494 = vdwg.mxu0
    %1495 = vmatpush.msra.mxu0 %v309
    %1496 = vmatpush.msra.mxu0 %v305
    %1497 = vmatpush.msra.mxu0 %v301
    %1498 = vmatpush.msra.mxu0 %v297
    %1499 = vmatpush.msra.mxu0 %v293
    %1500 = vmatpush.msra.mxu0 %v289
    %1501 = vmatpush.msra.mxu0 %v285
    %1502 = vmatpush.msra.mxu0 %v281
    %1503 = vmatpush.msra.mxu0 %v277
    %1504 = vmatpush.msra.mxu0 %v273
    %1505 = vmatpush.msra.mxu0 %v269
    %1506 = vmatpush.msra.mxu0 %v265
    %1507 = vmatpush.msra.mxu0 %v261
    %1508 = vmatpush.msra.mxu0 %v257
    %1509 = vmatpush.msra.mxu0 %v253
    %1510 = vmatpush.msra.mxu0 %v249
    %1511 = vmatmul.f32.gmra.mxu0 %v97
    %v1512 = vpop.f32.mrf.mxu0
    %v1513 = vadd.f32 %v1490, %v1512
    %1514 = vmatmul.f32.gmra.mxu0 %v109
    %v1515 = vpop.f32.mrf.mxu0
    %v1516 = vadd.f32 %v1493, %v1515
    %1517 = vdwg.mxu0
    %1518 = vmatpush.msra.mxu0 %v373
    %1519 = vmatpush.msra.mxu0 %v369
    %1520 = vmatpush.msra.mxu0 %v365
    %1521 = vmatpush.msra.mxu0 %v361
    %1522 = vmatpush.msra.mxu0 %v357
    %1523 = vmatpush.msra.mxu0 %v353
    %1524 = vmatpush.msra.mxu0 %v349
    %1525 = vmatpush.msra.mxu0 %v345
    %1526 = vmatpush.msra.mxu0 %v341
    %1527 = vmatpush.msra.mxu0 %v337
    %1528 = vmatpush.msra.mxu0 %v333
    %1529 = vmatpush.msra.mxu0 %v329
    %1530 = vmatpush.msra.mxu0 %v325
    %1531 = vmatpush.msra.mxu0 %v321
    %1532 = vmatpush.msra.mxu0 %v317
    %1533 = vmatpush.msra.mxu0 %v313
    %1534 = vmatmul.f32.gmra.mxu0 %v98
    %v1535 = vpop.f32.mrf.mxu0
    %v1536 = vadd.f32 %v1513, %v1535
    %1537 = vmatmul.f32.gmra.mxu0 %v110
    %v1538 = vpop.f32.mrf.mxu0
    %v1539 = vadd.f32 %v1516, %v1538
    %1540 = vdwg.mxu0
    %1541 = vmatpush.msra.mxu0 %v437
    %1542 = vmatpush.msra.mxu0 %v433
    %1543 = vmatpush.msra.mxu0 %v429
    %1544 = vmatpush.msra.mxu0 %v425
    %1545 = vmatpush.msra.mxu0 %v421
    %1546 = vmatpush.msra.mxu0 %v417
    %1547 = vmatpush.msra.mxu0 %v413
    %1548 = vmatpush.msra.mxu0 %v409
    %1549 = vmatpush.msra.mxu0 %v405
    %1550 = vmatpush.msra.mxu0 %v401
    %1551 = vmatpush.msra.mxu0 %v397
    %1552 = vmatpush.msra.mxu0 %v393
    %1553 = vmatpush.msra.mxu0 %v389
    %1554 = vmatpush.msra.mxu0 %v385
    %1555 = vmatpush.msra.mxu0 %v381
    %1556 = vmatpush.msra.mxu0 %v377
    %1557 = vmatmul.f32.gmra.mxu0 %v99
    %v1558 = vpop.f32.mrf.mxu0
    %v1559 = vadd.f32 %v1536, %v1558
    %1560 = vmatmul.f32.gmra.mxu0 %v111
    %v1561 = vpop.f32.mrf.mxu0
    %v1562 = vadd.f32 %v1539, %v1561
    %1563 = vdwg.mxu0
    %1564 = vmatpush.msra.mxu0 %v501
    %1565 = vmatpush.msra.mxu0 %v497
    %1566 = vmatpush.msra.mxu0 %v493
    %1567 = vmatpush.msra.mxu0 %v489
    %1568 = vmatpush.msra.mxu0 %v485
    %1569 = vmatpush.msra.mxu0 %v481
    %1570 = vmatpush.msra.mxu0 %v477
    %1571 = vmatpush.msra.mxu0 %v473
    %1572 = vmatpush.msra.mxu0 %v469
    %1573 = vmatpush.msra.mxu0 %v465
    %1574 = vmatpush.msra.mxu0 %v461
    %1575 = vmatpush.msra.mxu0 %v457
    %1576 = vmatpush.msra.mxu0 %v453
    %1577 = vmatpush.msra.mxu0 %v449
    %1578 = vmatpush.msra.mxu0 %v445
    %1579 = vmatpush.msra.mxu0 %v441
    %1580 = vmatmul.f32.gmra.mxu0 %v100
    %v1581 = vpop.f32.mrf.mxu0
    %v1582 = vadd.f32 %v1559, %v1581
    %1583 = vmatmul.f32.gmra.mxu0 %v112
    %v1584 = vpop.f32.mrf.mxu0
    %v1585 = vadd.f32 %v1562, %v1584
    %1586 = vdwg.mxu0
    %1587 = vmatpush.msra.mxu0 %v565
    %1588 = vmatpush.msra.mxu0 %v561
    %1589 = vmatpush.msra.mxu0 %v557
    %1590 = vmatpush.msra.mxu0 %v553
    %1591 = vmatpush.msra.mxu0 %v549
    %1592 = vmatpush.msra.mxu0 %v545
    %1593 = vmatpush.msra.mxu0 %v541
    %1594 = vmatpush.msra.mxu0 %v537
    %1595 = vmatpush.msra.mxu0 %v533
    %1596 = vmatpush.msra.mxu0 %v529
    %1597 = vmatpush.msra.mxu0 %v525
    %1598 = vmatpush.msra.mxu0 %v521
    %1599 = vmatpush.msra.mxu0 %v517
    %1600 = vmatpush.msra.mxu0 %v513
    %1601 = vmatpush.msra.mxu0 %v509
    %1602 = vmatpush.msra.mxu0 %v505
    %1603 = vmatmul.f32.gmra.mxu0 %v101
    %v1604 = vpop.f32.mrf.mxu0
    %v1605 = vadd.f32 %v1582, %v1604
    %1606 = vmatmul.f32.gmra.mxu0 %v113
    %v1607 = vpop.f32.mrf.mxu0
    %v1608 = vadd.f32 %v1585, %v1607
    %1609 = vdwg.mxu0
    %1610 = vmatpush.msra.mxu0 %v629
    %1611 = vmatpush.msra.mxu0 %v625
    %1612 = vmatpush.msra.mxu0 %v621
    %1613 = vmatpush.msra.mxu0 %v617
    %1614 = vmatpush.msra.mxu0 %v613
    %1615 = vmatpush.msra.mxu0 %v609
    %1616 = vmatpush.msra.mxu0 %v605
    %1617 = vmatpush.msra.mxu0 %v601
    %1618 = vmatpush.msra.mxu0 %v597
    %1619 = vmatpush.msra.mxu0 %v593
    %1620 = vmatpush.msra.mxu0 %v589
    %1621 = vmatpush.msra.mxu0 %v585
    %1622 = vmatpush.msra.mxu0 %v581
    %1623 = vmatpush.msra.mxu0 %v577
    %1624 = vmatpush.msra.mxu0 %v573
    %1625 = vmatpush.msra.mxu0 %v569
    %1626 = vmatmul.f32.gmra.mxu0 %v102
    %v1627 = vpop.f32.mrf.mxu0
    %v1628 = vadd.f32 %v1605, %v1627
    %1629 = vmatmul.f32.gmra.mxu0 %v114
    %v1630 = vpop.f32.mrf.mxu0
    %v1631 = vadd.f32 %v1608, %v1630
    %1632 = vdwg.mxu0
    %1633 = vmatpush.msra.mxu0 %v693
    %1634 = vmatpush.msra.mxu0 %v689
    %1635 = vmatpush.msra.mxu0 %v685
    %1636 = vmatpush.msra.mxu0 %v681
    %1637 = vmatpush.msra.mxu0 %v677
    %1638 = vmatpush.msra.mxu0 %v673
    %1639 = vmatpush.msra.mxu0 %v669
    %1640 = vmatpush.msra.mxu0 %v665
    %1641 = vmatpush.msra.mxu0 %v661
    %1642 = vmatpush.msra.mxu0 %v657
    %1643 = vmatpush.msra.mxu0 %v653
    %1644 = vmatpush.msra.mxu0 %v649
    %1645 = vmatpush.msra.mxu0 %v645
    %1646 = vmatpush.msra.mxu0 %v641
    %1647 = vmatpush.msra.mxu0 %v637
    %1648 = vmatpush.msra.mxu0 %v633
    %1649 = vmatmul.f32.gmra.mxu0 %v103
    %v1650 = vpop.f32.mrf.mxu0
    %v1651 = vadd.f32 %v1628, %v1650
    %1652 = vmatmul.f32.gmra.mxu0 %v115
    %v1653 = vpop.f32.mrf.mxu0
    %v1654 = vadd.f32 %v1631, %v1653
    %1655 = vdwg.mxu0
    %1656 = vmatpush.msra.mxu0 %v757
    %1657 = vmatpush.msra.mxu0 %v753
    %1658 = vmatpush.msra.mxu0 %v749
    %1659 = vmatpush.msra.mxu0 %v745
    %1660 = vmatpush.msra.mxu0 %v741
    %1661 = vmatpush.msra.mxu0 %v737
    %1662 = vmatpush.msra.mxu0 %v733
    %1663 = vmatpush.msra.mxu0 %v729
    %1664 = vmatpush.msra.mxu0 %v725
    %1665 = vmatpush.msra.mxu0 %v721
    %1666 = vmatpush.msra.mxu0 %v717
    %1667 = vmatpush.msra.mxu0 %v713
    %1668 = vmatpush.msra.mxu0 %v709
    %1669 = vmatpush.msra.mxu0 %v705
    %1670 = vmatpush.msra.mxu0 %v701
    %1671 = vmatpush.msra.mxu0 %v697
    %1672 = vmatmul.f32.gmra.mxu0 %v104
    %v1673 = vpop.f32.mrf.mxu0
    %v1674 = vadd.f32 %v1651, %v1673
    %1675 = vmatmul.f32.gmra.mxu0 %v116
    %v1676 = vpop.f32.mrf.mxu0
    %v1677 = vadd.f32 %v1654, %v1676
    %1678 = vdwg.mxu0
    %1679 = vmatpush.msra.mxu0 %v821
    %1680 = vmatpush.msra.mxu0 %v817
    %1681 = vmatpush.msra.mxu0 %v813
    %1682 = vmatpush.msra.mxu0 %v809
    %1683 = vmatpush.msra.mxu0 %v805
    %1684 = vmatpush.msra.mxu0 %v801
    %1685 = vmatpush.msra.mxu0 %v797
    %1686 = vmatpush.msra.mxu0 %v793
    %1687 = vmatpush.msra.mxu0 %v789
    %1688 = vmatpush.msra.mxu0 %v785
    %1689 = vmatpush.msra.mxu0 %v781
    %1690 = vmatpush.msra.mxu0 %v777
    %1691 = vmatpush.msra.mxu0 %v773
    %1692 = vmatpush.msra.mxu0 %v769
    %1693 = vmatpush.msra.mxu0 %v765
    %1694 = vmatpush.msra.mxu0 %v761
    %1695 = vmatmul.f32.gmra.mxu0 %v105
    %v1696 = vpop.f32.mrf.mxu0
    %v1697 = vadd.f32 %v1674, %v1696
    %1698 = vmatmul.f32.gmra.mxu0 %v117
    %v1699 = vpop.f32.mrf.mxu0
    %v1700 = vadd.f32 %v1677, %v1699
    %1701 = vdwg.mxu0
    %1702 = vmatpush.msra.mxu0 %v885
    %1703 = vmatpush.msra.mxu0 %v881
    %1704 = vmatpush.msra.mxu0 %v877
    %1705 = vmatpush.msra.mxu0 %v873
    %1706 = vmatpush.msra.mxu0 %v869
    %1707 = vmatpush.msra.mxu0 %v865
    %1708 = vmatpush.msra.mxu0 %v861
    %1709 = vmatpush.msra.mxu0 %v857
    %1710 = vmatpush.msra.mxu0 %v853
    %1711 = vmatpush.msra.mxu0 %v849
    %1712 = vmatpush.msra.mxu0 %v845
    %1713 = vmatpush.msra.mxu0 %v841
    %1714 = vmatpush.msra.mxu0 %v837
    %1715 = vmatpush.msra.mxu0 %v833
    %1716 = vmatpush.msra.mxu0 %v829
    %1717 = vmatpush.msra.mxu0 %v825
    %1718 = vmatmul.f32.gmra.mxu0 %v106
    %v1719 = vpop.f32.mrf.mxu0
    %v1720 = vadd.f32 %v1697, %v1719
    %1721 = vmatmul.f32.gmra.mxu0 %v118
    %v1722 = vpop.f32.mrf.mxu0
    %v1723 = vadd.f32 %v1700, %v1722
    %1724 = vdwg.mxu0
    %1725 = vmatpush.msra.mxu0 %v182
    %1726 = vmatpush.msra.mxu0 %v178
    %1727 = vmatpush.msra.mxu0 %v174
    %1728 = vmatpush.msra.mxu0 %v170
    %1729 = vmatpush.msra.mxu0 %v166
    %1730 = vmatpush.msra.mxu0 %v162
    %1731 = vmatpush.msra.mxu0 %v158
    %1732 = vmatpush.msra.mxu0 %v154
    %1733 = vmatpush.msra.mxu0 %v150
    %1734 = vmatpush.msra.mxu0 %v146
    %1735 = vmatpush.msra.mxu0 %v142
    %1736 = vmatpush.msra.mxu0 %v138
    %1737 = vmatpush.msra.mxu0 %v134
    %1738 = vmatpush.msra.mxu0 %v130
    %1739 = vmatpush.msra.mxu0 %v126
    %1740 = vmatpush.msra.mxu0 %v122
    %1741 = vmatmul.f32.gmra.mxu0 %v95
    %v1742 = vpop.f32.mrf.mxu0
    %v1743 = vadd.f32 %v892, %v1742
    %1744 = vmatmul.f32.gmra.mxu0 %v107
    %v1745 = vpop.f32.mrf.mxu0
    %v1746 = vadd.f32 %v892, %v1745
    %1747 = vdwg.mxu0
    %1748 = vmatpush.msra.mxu0 %v246
    %1749 = vmatpush.msra.mxu0 %v242
    %1750 = vmatpush.msra.mxu0 %v238
    %1751 = vmatpush.msra.mxu0 %v234
    %1752 = vmatpush.msra.mxu0 %v230
    %1753 = vmatpush.msra.mxu0 %v226
    %1754 = vmatpush.msra.mxu0 %v222
    %1755 = vmatpush.msra.mxu0 %v218
    %1756 = vmatpush.msra.mxu0 %v214
    %1757 = vmatpush.msra.mxu0 %v210
    %1758 = vmatpush.msra.mxu0 %v206
    %1759 = vmatpush.msra.mxu0 %v202
    %1760 = vmatpush.msra.mxu0 %v198
    %1761 = vmatpush.msra.mxu0 %v194
    %1762 = vmatpush.msra.mxu0 %v190
    %1763 = vmatpush.msra.mxu0 %v186
    %1764 = vmatmul.f32.gmra.mxu0 %v96
    %v1765 = vpop.f32.mrf.mxu0
    %v1766 = vadd.f32 %v1743, %v1765
    %1767 = vmatmul.f32.gmra.mxu0 %v108
    %v1768 = vpop.f32.mrf.mxu0
    %v1769 = vadd.f32 %v1746, %v1768
    %1770 = vdwg.mxu0
    %1771 = vmatpush.msra.mxu0 %v310
    %1772 = vmatpush.msra.mxu0 %v306
    %1773 = vmatpush.msra.mxu0 %v302
    %1774 = vmatpush.msra.mxu0 %v298
    %1775 = vmatpush.msra.mxu0 %v294
    %1776 = vmatpush.msra.mxu0 %v290
    %1777 = vmatpush.msra.mxu0 %v286
    %1778 = vmatpush.msra.mxu0 %v282
    %1779 = vmatpush.msra.mxu0 %v278
    %1780 = vmatpush.msra.mxu0 %v274
    %1781 = vmatpush.msra.mxu0 %v270
    %1782 = vmatpush.msra.mxu0 %v266
    %1783 = vmatpush.msra.mxu0 %v262
    %1784 = vmatpush.msra.mxu0 %v258
    %1785 = vmatpush.msra.mxu0 %v254
    %1786 = vmatpush.msra.mxu0 %v250
    %1787 = vmatmul.f32.gmra.mxu0 %v97
    %v1788 = vpop.f32.mrf.mxu0
    %v1789 = vadd.f32 %v1766, %v1788
    %1790 = vmatmul.f32.gmra.mxu0 %v109
    %v1791 = vpop.f32.mrf.mxu0
    %v1792 = vadd.f32 %v1769, %v1791
    %1793 = vdwg.mxu0
    %1794 = vmatpush.msra.mxu0 %v374
    %1795 = vmatpush.msra.mxu0 %v370
    %1796 = vmatpush.msra.mxu0 %v366
    %1797 = vmatpush.msra.mxu0 %v362
    %1798 = vmatpush.msra.mxu0 %v358
    %1799 = vmatpush.msra.mxu0 %v354
    %1800 = vmatpush.msra.mxu0 %v350
    %1801 = vmatpush.msra.mxu0 %v346
    %1802 = vmatpush.msra.mxu0 %v342
    %1803 = vmatpush.msra.mxu0 %v338
    %1804 = vmatpush.msra.mxu0 %v334
    %1805 = vmatpush.msra.mxu0 %v330
    %1806 = vmatpush.msra.mxu0 %v326
    %1807 = vmatpush.msra.mxu0 %v322
    %1808 = vmatpush.msra.mxu0 %v318
    %1809 = vmatpush.msra.mxu0 %v314
    %1810 = vmatmul.f32.gmra.mxu0 %v98
    %v1811 = vpop.f32.mrf.mxu0
    %v1812 = vadd.f32 %v1789, %v1811
    %1813 = vmatmul.f32.gmra.mxu0 %v110
    %v1814 = vpop.f32.mrf.mxu0
    %v1815 = vadd.f32 %v1792, %v1814
    %1816 = vdwg.mxu0
    %1817 = vmatpush.msra.mxu0 %v438
    %1818 = vmatpush.msra.mxu0 %v434
    %1819 = vmatpush.msra.mxu0 %v430
    %1820 = vmatpush.msra.mxu0 %v426
    %1821 = vmatpush.msra.mxu0 %v422
    %1822 = vmatpush.msra.mxu0 %v418
    %1823 = vmatpush.msra.mxu0 %v414
    %1824 = vmatpush.msra.mxu0 %v410
    %1825 = vmatpush.msra.mxu0 %v406
    %1826 = vmatpush.msra.mxu0 %v402
    %1827 = vmatpush.msra.mxu0 %v398
    %1828 = vmatpush.msra.mxu0 %v394
    %1829 = vmatpush.msra.mxu0 %v390
    %1830 = vmatpush.msra.mxu0 %v386
    %1831 = vmatpush.msra.mxu0 %v382
    %1832 = vmatpush.msra.mxu0 %v378
    %1833 = vmatmul.f32.gmra.mxu0 %v99
    %v1834 = vpop.f32.mrf.mxu0
    %v1835 = vadd.f32 %v1812, %v1834
    %1836 = vmatmul.f32.gmra.mxu0 %v111
    %v1837 = vpop.f32.mrf.mxu0
    %v1838 = vadd.f32 %v1815, %v1837
    %1839 = vdwg.mxu0
    %1840 = vmatpush.msra.mxu0 %v502
    %1841 = vmatpush.msra.mxu0 %v498
    %1842 = vmatpush.msra.mxu0 %v494
    %1843 = vmatpush.msra.mxu0 %v490
    %1844 = vmatpush.msra.mxu0 %v486
    %1845 = vmatpush.msra.mxu0 %v482
    %1846 = vmatpush.msra.mxu0 %v478
    %1847 = vmatpush.msra.mxu0 %v474
    %1848 = vmatpush.msra.mxu0 %v470
    %1849 = vmatpush.msra.mxu0 %v466
    %1850 = vmatpush.msra.mxu0 %v462
    %1851 = vmatpush.msra.mxu0 %v458
    %1852 = vmatpush.msra.mxu0 %v454
    %1853 = vmatpush.msra.mxu0 %v450
    %1854 = vmatpush.msra.mxu0 %v446
    %1855 = vmatpush.msra.mxu0 %v442
    %1856 = vmatmul.f32.gmra.mxu0 %v100
    %v1857 = vpop.f32.mrf.mxu0
    %v1858 = vadd.f32 %v1835, %v1857
    %1859 = vmatmul.f32.gmra.mxu0 %v112
    %v1860 = vpop.f32.mrf.mxu0
    %v1861 = vadd.f32 %v1838, %v1860
    %1862 = vdwg.mxu0
    %1863 = vmatpush.msra.mxu0 %v566
    %1864 = vmatpush.msra.mxu0 %v562
    %1865 = vmatpush.msra.mxu0 %v558
    %1866 = vmatpush.msra.mxu0 %v554
    %1867 = vmatpush.msra.mxu0 %v550
    %1868 = vmatpush.msra.mxu0 %v546
    %1869 = vmatpush.msra.mxu0 %v542
    %1870 = vmatpush.msra.mxu0 %v538
    %1871 = vmatpush.msra.mxu0 %v534
    %1872 = vmatpush.msra.mxu0 %v530
    %1873 = vmatpush.msra.mxu0 %v526
    %1874 = vmatpush.msra.mxu0 %v522
    %1875 = vmatpush.msra.mxu0 %v518
    %1876 = vmatpush.msra.mxu0 %v514
    %1877 = vmatpush.msra.mxu0 %v510
    %1878 = vmatpush.msra.mxu0 %v506
    %1879 = vmatmul.f32.gmra.mxu0 %v101
    %v1880 = vpop.f32.mrf.mxu0
    %v1881 = vadd.f32 %v1858, %v1880
    %1882 = vmatmul.f32.gmra.mxu0 %v113
    %v1883 = vpop.f32.mrf.mxu0
    %v1884 = vadd.f32 %v1861, %v1883
    %1885 = vdwg.mxu0
    %1886 = vmatpush.msra.mxu0 %v630
    %1887 = vmatpush.msra.mxu0 %v626
    %1888 = vmatpush.msra.mxu0 %v622
    %1889 = vmatpush.msra.mxu0 %v618
    %1890 = vmatpush.msra.mxu0 %v614
    %1891 = vmatpush.msra.mxu0 %v610
    %1892 = vmatpush.msra.mxu0 %v606
    %1893 = vmatpush.msra.mxu0 %v602
    %1894 = vmatpush.msra.mxu0 %v598
    %1895 = vmatpush.msra.mxu0 %v594
    %1896 = vmatpush.msra.mxu0 %v590
    %1897 = vmatpush.msra.mxu0 %v586
    %1898 = vmatpush.msra.mxu0 %v582
    %1899 = vmatpush.msra.mxu0 %v578
    %1900 = vmatpush.msra.mxu0 %v574
    %1901 = vmatpush.msra.mxu0 %v570
    %1902 = vmatmul.f32.gmra.mxu0 %v102
    %v1903 = vpop.f32.mrf.mxu0
    %v1904 = vadd.f32 %v1881, %v1903
    %1905 = vmatmul.f32.gmra.mxu0 %v114
    %v1906 = vpop.f32.mrf.mxu0
    %v1907 = vadd.f32 %v1884, %v1906
    %1908 = vdwg.mxu0
    %1909 = vmatpush.msra.mxu0 %v694
    %1910 = vmatpush.msra.mxu0 %v690
    %1911 = vmatpush.msra.mxu0 %v686
    %1912 = vmatpush.msra.mxu0 %v682
    %1913 = vmatpush.msra.mxu0 %v678
    %1914 = vmatpush.msra.mxu0 %v674
    %1915 = vmatpush.msra.mxu0 %v670
    %1916 = vmatpush.msra.mxu0 %v666
    %1917 = vmatpush.msra.mxu0 %v662
    %1918 = vmatpush.msra.mxu0 %v658
    %1919 = vmatpush.msra.mxu0 %v654
    %1920 = vmatpush.msra.mxu0 %v650
    %1921 = vmatpush.msra.mxu0 %v646
    %1922 = vmatpush.msra.mxu0 %v642
    %1923 = vmatpush.msra.mxu0 %v638
    %1924 = vmatpush.msra.mxu0 %v634
    %1925 = vmatmul.f32.gmra.mxu0 %v103
    %v1926 = vpop.f32.mrf.mxu0
    %v1927 = vadd.f32 %v1904, %v1926
    %1928 = vmatmul.f32.gmra.mxu0 %v115
    %v1929 = vpop.f32.mrf.mxu0
    %v1930 = vadd.f32 %v1907, %v1929
    %1931 = vdwg.mxu0
    %1932 = vmatpush.msra.mxu0 %v758
    %1933 = vmatpush.msra.mxu0 %v754
    %1934 = vmatpush.msra.mxu0 %v750
    %1935 = vmatpush.msra.mxu0 %v746
    %1936 = vmatpush.msra.mxu0 %v742
    %1937 = vmatpush.msra.mxu0 %v738
    %1938 = vmatpush.msra.mxu0 %v734
    %1939 = vmatpush.msra.mxu0 %v730
    %1940 = vmatpush.msra.mxu0 %v726
    %1941 = vmatpush.msra.mxu0 %v722
    %1942 = vmatpush.msra.mxu0 %v718
    %1943 = vmatpush.msra.mxu0 %v714
    %1944 = vmatpush.msra.mxu0 %v710
    %1945 = vmatpush.msra.mxu0 %v706
    %1946 = vmatpush.msra.mxu0 %v702
    %1947 = vmatpush.msra.mxu0 %v698
    %1948 = vmatmul.f32.gmra.mxu0 %v104
    %v1949 = vpop.f32.mrf.mxu0
    %v1950 = vadd.f32 %v1927, %v1949
    %1951 = vmatmul.f32.gmra.mxu0 %v116
    %v1952 = vpop.f32.mrf.mxu0
    %v1953 = vadd.f32 %v1930, %v1952
    %1954 = vdwg.mxu0
    %1955 = vmatpush.msra.mxu0 %v822
    %1956 = vmatpush.msra.mxu0 %v818
    %1957 = vmatpush.msra.mxu0 %v814
    %1958 = vmatpush.msra.mxu0 %v810
    %1959 = vmatpush.msra.mxu0 %v806
    %1960 = vmatpush.msra.mxu0 %v802
    %1961 = vmatpush.msra.mxu0 %v798
    %1962 = vmatpush.msra.mxu0 %v794
    %1963 = vmatpush.msra.mxu0 %v790
    %1964 = vmatpush.msra.mxu0 %v786
    %1965 = vmatpush.msra.mxu0 %v782
    %1966 = vmatpush.msra.mxu0 %v778
    %1967 = vmatpush.msra.mxu0 %v774
    %1968 = vmatpush.msra.mxu0 %v770
    %1969 = vmatpush.msra.mxu0 %v766
    %1970 = vmatpush.msra.mxu0 %v762
    %1971 = vmatmul.f32.gmra.mxu0 %v105
    %v1972 = vpop.f32.mrf.mxu0
    %v1973 = vadd.f32 %v1950, %v1972
    %1974 = vmatmul.f32.gmra.mxu0 %v117
    %v1975 = vpop.f32.mrf.mxu0
    %v1976 = vadd.f32 %v1953, %v1975
    %1977 = vdwg.mxu0
    %1978 = vmatpush.msra.mxu0 %v886
    %1979 = vmatpush.msra.mxu0 %v882
    %1980 = vmatpush.msra.mxu0 %v878
    %1981 = vmatpush.msra.mxu0 %v874
    %1982 = vmatpush.msra.mxu0 %v870
    %1983 = vmatpush.msra.mxu0 %v866
    %1984 = vmatpush.msra.mxu0 %v862
    %1985 = vmatpush.msra.mxu0 %v858
    %1986 = vmatpush.msra.mxu0 %v854
    %1987 = vmatpush.msra.mxu0 %v850
    %1988 = vmatpush.msra.mxu0 %v846
    %1989 = vmatpush.msra.mxu0 %v842
    %1990 = vmatpush.msra.mxu0 %v838
    %1991 = vmatpush.msra.mxu0 %v834
    %1992 = vmatpush.msra.mxu0 %v830
    %1993 = vmatpush.msra.mxu0 %v826
    %1994 = vmatmul.f32.gmra.mxu0 %v106
    %v1995 = vpop.f32.mrf.mxu0
    %v1996 = vadd.f32 %v1973, %v1995
    %1997 = vmatmul.f32.gmra.mxu0 %v118
    %v1998 = vpop.f32.mrf.mxu0
    %v1999 = vadd.f32 %v1976, %v1998
    %2000 = vdwg.mxu0
    %v2001 = vmax.f32 %v1168, 0.0
    %v2002 = vmax.f32 %v1444, 0.0
    %v2003 = vmax.f32 %v1720, 0.0
    %v2004 = vmax.f32 %v1996, 0.0
    %v2005 = vmax.f32 %v1171, 0.0
    %v2006 = vmax.f32 %v1447, 0.0
    %v2007 = vmax.f32 %v1723, 0.0
    %v2008 = vmax.f32 %v1999, 0.0
    %v2009 = vld [vmem:[#allocation8] sm:$0xff]
    %v2010 = vld [vmem:[#allocation8 + $0x8] sm:$0xff]
    %v2011 = vld [vmem:[#allocation8 + $0x10] sm:$0xff]
    %v2012 = vld [vmem:[#allocation8 + $0x18] sm:$0xff]
    %v2013 = vld [vmem:[#allocation8 + $0x20] sm:$0xff]
    %v2014 = vld [vmem:[#allocation8 + $0x28] sm:$0xff]
    %v2015 = vld [vmem:[#allocation8 + $0x30] sm:$0xff]
    %v2016 = vld [vmem:[#allocation8 + $0x38] sm:$0xff]
    %v2017 = vld [vmem:[#allocation8 + $0x40] sm:$0xff]
    %v2018 = vld [vmem:[#allocation8 + $0x48] sm:$0xff]
    %v2019 = vld [vmem:[#allocation8 + $0x50] sm:$0xff]
    %v2020 = vld [vmem:[#allocation8 + $0x58] sm:$0xff]
    %v2021 = vld [vmem:[#allocation8 + $0x60] sm:$0xff]
    %v2022 = vld [vmem:[#allocation8 + $0x68] sm:$0xff]
    %v2023 = vld [vmem:[#allocation8 + $0x70] sm:$0xff]
    %v2024 = vld [vmem:[#allocation8 + $0x78] sm:$0xff]
    %v2025 = vld [vmem:[#allocation8 + $0x80] sm:$0xff]
    %v2026 = vld [vmem:[#allocation8 + $0x88] sm:$0xff]
    %v2027 = vld [vmem:[#allocation8 + $0x90] sm:$0xff]
    %v2028 = vld [vmem:[#allocation8 + $0x98] sm:$0xff]
    %v2029 = vld [vmem:[#allocation8 + $0xa0] sm:$0xff]
    %v2030 = vld [vmem:[#allocation8 + $0xa8] sm:$0xff]
    %v2031 = vld [vmem:[#allocation8 + $0xb0] sm:$0xff]
    %v2032 = vld [vmem:[#allocation8 + $0xb8] sm:$0xff]
    %v2033 = vld [vmem:[#allocation8 + $0xc0] sm:$0xff]
    %v2034 = vld [vmem:[#allocation8 + $0xc8] sm:$0xff]
    %v2035 = vld [vmem:[#allocation8 + $0xd0] sm:$0xff]
    %v2036 = vld [vmem:[#allocation8 + $0xd8] sm:$0xff]
    %v2037 = vld [vmem:[#allocation8 + $0xe0] sm:$0xff]
    %v2038 = vld [vmem:[#allocation8 + $0xe8] sm:$0xff]
    %v2039 = vld [vmem:[#allocation8 + $0xf0] sm:$0xff]
    %v2040 = vld [vmem:[#allocation8 + $0xf8] sm:$0xff]
    %v2041 = vld [vmem:[#allocation8 + $0x100] sm:$0xff]
    %v2042 = vld [vmem:[#allocation8 + $0x108] sm:$0xff]
    %v2043 = vld [vmem:[#allocation8 + $0x110] sm:$0xff]
    %v2044 = vld [vmem:[#allocation8 + $0x118] sm:$0xff]
    %v2045 = vld [vmem:[#allocation8 + $0x120] sm:$0xff]
    %v2046 = vld [vmem:[#allocation8 + $0x128] sm:$0xff]
    %v2047 = vld [vmem:[#allocation8 + $0x130] sm:$0xff]
    %v2048 = vld [vmem:[#allocation8 + $0x138] sm:$0xff]
    %v2049 = vld [vmem:[#allocation8 + $0x140] sm:$0xff]
    %v2050 = vld [vmem:[#allocation8 + $0x148] sm:$0xff]
    %v2051 = vld [vmem:[#allocation8 + $0x150] sm:$0xff]
    %v2052 = vld [vmem:[#allocation8 + $0x158] sm:$0xff]
    %v2053 = vld [vmem:[#allocation8 + $0x160] sm:$0xff]
    %v2054 = vld [vmem:[#allocation8 + $0x168] sm:$0xff]
    %v2055 = vld [vmem:[#allocation8 + $0x170] sm:$0xff]
    %v2056 = vld [vmem:[#allocation8 + $0x178] sm:$0xff]
    %v2057 = vld [vmem:[#allocation8 + $0x180] sm:$0xff]
    %v2058 = vld [vmem:[#allocation8 + $0x188] sm:$0xff]
    %v2059 = vld [vmem:[#allocation8 + $0x190] sm:$0xff]
    %v2060 = vld [vmem:[#allocation8 + $0x198] sm:$0xff]
    %v2061 = vld [vmem:[#allocation8 + $0x1a0] sm:$0xff]
    %v2062 = vld [vmem:[#allocation8 + $0x1a8] sm:$0xff]
    %v2063 = vld [vmem:[#allocation8 + $0x1b0] sm:$0xff]
    %v2064 = vld [vmem:[#allocation8 + $0x1b8] sm:$0xff]
    %v2065 = vld [vmem:[#allocation8 + $0x1c0] sm:$0xff]
    %v2066 = vld [vmem:[#allocation8 + $0x1c8] sm:$0xff]
    %v2067 = vld [vmem:[#allocation8 + $0x1d0] sm:$0xff]
    %v2068 = vld [vmem:[#allocation8 + $0x1d8] sm:$0xff]
    %v2069 = vld [vmem:[#allocation8 + $0x1e0] sm:$0xff]
    %v2070 = vld [vmem:[#allocation8 + $0x1e8] sm:$0xff]
    %v2071 = vld [vmem:[#allocation8 + $0x1f0] sm:$0xff]
    %v2072 = vld [vmem:[#allocation8 + $0x1f8] sm:$0xff]
    %v2073 = vld [vmem:[#allocation8 + $0x200] sm:$0xff]
    %v2074 = vld [vmem:[#allocation8 + $0x208] sm:$0xff]
    %v2075 = vld [vmem:[#allocation8 + $0x210] sm:$0xff]
    %v2076 = vld [vmem:[#allocation8 + $0x218] sm:$0xff]
    %v2077 = vld [vmem:[#allocation8 + $0x220] sm:$0xff]
    %v2078 = vld [vmem:[#allocation8 + $0x228] sm:$0xff]
    %v2079 = vld [vmem:[#allocation8 + $0x230] sm:$0xff]
    %v2080 = vld [vmem:[#allocation8 + $0x238] sm:$0xff]
    %v2081 = vld [vmem:[#allocation8 + $0x240] sm:$0xff]
    %v2082 = vld [vmem:[#allocation8 + $0x248] sm:$0xff]
    %v2083 = vld [vmem:[#allocation8 + $0x250] sm:$0xff]
    %v2084 = vld [vmem:[#allocation8 + $0x258] sm:$0xff]
    %v2085 = vld [vmem:[#allocation8 + $0x260] sm:$0xff]
    %v2086 = vld [vmem:[#allocation8 + $0x268] sm:$0xff]
    %v2087 = vld [vmem:[#allocation8 + $0x270] sm:$0xff]
    %v2088 = vld [vmem:[#allocation8 + $0x278] sm:$0xff]
    %v2089 = vld [vmem:[#allocation8 + $0x280] sm:$0xff]
    %v2090 = vld [vmem:[#allocation8 + $0x288] sm:$0xff]
    %v2091 = vld [vmem:[#allocation8 + $0x290] sm:$0xff]
    %v2092 = vld [vmem:[#allocation8 + $0x298] sm:$0xff]
    %v2093 = vld [vmem:[#allocation8 + $0x2a0] sm:$0xff]
    %v2094 = vld [vmem:[#allocation8 + $0x2a8] sm:$0xff]
    %v2095 = vld [vmem:[#allocation8 + $0x2b0] sm:$0xff]
    %v2096 = vld [vmem:[#allocation8 + $0x2b8] sm:$0xff]
    %v2097 = vld [vmem:[#allocation8 + $0x2c0] sm:$0xff]
    %v2098 = vld [vmem:[#allocation8 + $0x2c8] sm:$0xff]
    %v2099 = vld [vmem:[#allocation8 + $0x2d0] sm:$0xff]
    %v2100 = vld [vmem:[#allocation8 + $0x2d8] sm:$0xff]
    %v2101 = vld [vmem:[#allocation8 + $0x2e0] sm:$0xff]
    %v2102 = vld [vmem:[#allocation8 + $0x2e8] sm:$0xff]
    %v2103 = vld [vmem:[#allocation8 + $0x2f0] sm:$0xff]
    %v2104 = vld [vmem:[#allocation8 + $0x2f8] sm:$0xff]
    %v2105 = vld [vmem:[#allocation8 + $0x300] sm:$0xff]
    %v2106 = vld [vmem:[#allocation8 + $0x308] sm:$0xff]
    %v2107 = vld [vmem:[#allocation8 + $0x310] sm:$0xff]
    %v2108 = vld [vmem:[#allocation8 + $0x318] sm:$0xff]
    %v2109 = vld [vmem:[#allocation8 + $0x320] sm:$0xff]
    %v2110 = vld [vmem:[#allocation8 + $0x328] sm:$0xff]
    %v2111 = vld [vmem:[#allocation8 + $0x330] sm:$0xff]
    %v2112 = vld [vmem:[#allocation8 + $0x338] sm:$0xff]
    %v2113 = vld [vmem:[#allocation8 + $0x340] sm:$0xff]
    %v2114 = vld [vmem:[#allocation8 + $0x348] sm:$0xff]
    %v2115 = vld [vmem:[#allocation8 + $0x350] sm:$0xff]
    %v2116 = vld [vmem:[#allocation8 + $0x358] sm:$0xff]
    %v2117 = vld [vmem:[#allocation8 + $0x360] sm:$0xff]
    %v2118 = vld [vmem:[#allocation8 + $0x368] sm:$0xff]
    %v2119 = vld [vmem:[#allocation8 + $0x370] sm:$0xff]
    %v2120 = vld [vmem:[#allocation8 + $0x378] sm:$0xff]
    %v2121 = vld [vmem:[#allocation8 + $0x380] sm:$0xff]
    %v2122 = vld [vmem:[#allocation8 + $0x388] sm:$0xff]
    %v2123 = vld [vmem:[#allocation8 + $0x390] sm:$0xff]
    %v2124 = vld [vmem:[#allocation8 + $0x398] sm:$0xff]
    %v2125 = vld [vmem:[#allocation8 + $0x3a0] sm:$0xff]
    %v2126 = vld [vmem:[#allocation8 + $0x3a8] sm:$0xff]
    %v2127 = vld [vmem:[#allocation8 + $0x3b0] sm:$0xff]
    %v2128 = vld [vmem:[#allocation8 + $0x3b8] sm:$0xff]
    %v2129 = vld [vmem:[#allocation8 + $0x3c0] sm:$0xff]
    %v2130 = vld [vmem:[#allocation8 + $0x3c8] sm:$0xff]
    %v2131 = vld [vmem:[#allocation8 + $0x3d0] sm:$0xff]
    %v2132 = vld [vmem:[#allocation8 + $0x3d8] sm:$0xff]
    %v2133 = vld [vmem:[#allocation8 + $0x3e0] sm:$0xff]
    %v2134 = vld [vmem:[#allocation8 + $0x3e8] sm:$0xff]
    %v2135 = vld [vmem:[#allocation8 + $0x3f0] sm:$0xff]
    %v2136 = vld [vmem:[#allocation8 + $0x3f8] sm:$0xff]
    %v2137 = vld [vmem:[#allocation8 + $0x400] sm:$0xff]
    %v2138 = vld [vmem:[#allocation8 + $0x408] sm:$0xff]
    %v2139 = vld [vmem:[#allocation8 + $0x410] sm:$0xff]
    %v2140 = vld [vmem:[#allocation8 + $0x418] sm:$0xff]
    %v2141 = vld [vmem:[#allocation8 + $0x420] sm:$0xff]
    %v2142 = vld [vmem:[#allocation8 + $0x428] sm:$0xff]
    %v2143 = vld [vmem:[#allocation8 + $0x430] sm:$0xff]
    %v2144 = vld [vmem:[#allocation8 + $0x438] sm:$0xff]
    %v2145 = vld [vmem:[#allocation8 + $0x440] sm:$0xff]
    %v2146 = vld [vmem:[#allocation8 + $0x448] sm:$0xff]
    %v2147 = vld [vmem:[#allocation8 + $0x450] sm:$0xff]
    %v2148 = vld [vmem:[#allocation8 + $0x458] sm:$0xff]
    %v2149 = vld [vmem:[#allocation8 + $0x460] sm:$0xff]
    %v2150 = vld [vmem:[#allocation8 + $0x468] sm:$0xff]
    %v2151 = vld [vmem:[#allocation8 + $0x470] sm:$0xff]
    %v2152 = vld [vmem:[#allocation8 + $0x478] sm:$0xff]
    %v2153 = vld [vmem:[#allocation8 + $0x480] sm:$0xff]
    %v2154 = vld [vmem:[#allocation8 + $0x488] sm:$0xff]
    %v2155 = vld [vmem:[#allocation8 + $0x490] sm:$0xff]
    %v2156 = vld [vmem:[#allocation8 + $0x498] sm:$0xff]
    %v2157 = vld [vmem:[#allocation8 + $0x4a0] sm:$0xff]
    %v2158 = vld [vmem:[#allocation8 + $0x4a8] sm:$0xff]
    %v2159 = vld [vmem:[#allocation8 + $0x4b0] sm:$0xff]
    %v2160 = vld [vmem:[#allocation8 + $0x4b8] sm:$0xff]
    %v2161 = vld [vmem:[#allocation8 + $0x4c0] sm:$0xff]
    %v2162 = vld [vmem:[#allocation8 + $0x4c8] sm:$0xff]
    %v2163 = vld [vmem:[#allocation8 + $0x4d0] sm:$0xff]
    %v2164 = vld [vmem:[#allocation8 + $0x4d8] sm:$0xff]
    %v2165 = vld [vmem:[#allocation8 + $0x4e0] sm:$0xff]
    %v2166 = vld [vmem:[#allocation8 + $0x4e8] sm:$0xff]
    %v2167 = vld [vmem:[#allocation8 + $0x4f0] sm:$0xff]
    %v2168 = vld [vmem:[#allocation8 + $0x4f8] sm:$0xff]
    %v2169 = vld [vmem:[#allocation8 + $0x500] sm:$0xff]
    %v2170 = vld [vmem:[#allocation8 + $0x508] sm:$0xff]
    %v2171 = vld [vmem:[#allocation8 + $0x510] sm:$0xff]
    %v2172 = vld [vmem:[#allocation8 + $0x518] sm:$0xff]
    %v2173 = vld [vmem:[#allocation8 + $0x520] sm:$0xff]
    %v2174 = vld [vmem:[#allocation8 + $0x528] sm:$0xff]
    %v2175 = vld [vmem:[#allocation8 + $0x530] sm:$0xff]
    %v2176 = vld [vmem:[#allocation8 + $0x538] sm:$0xff]
    %v2177 = vld [vmem:[#allocation8 + $0x540] sm:$0xff]
    %v2178 = vld [vmem:[#allocation8 + $0x548] sm:$0xff]
    %v2179 = vld [vmem:[#allocation8 + $0x550] sm:$0xff]
    %v2180 = vld [vmem:[#allocation8 + $0x558] sm:$0xff]
    %v2181 = vld [vmem:[#allocation8 + $0x560] sm:$0xff]
    %v2182 = vld [vmem:[#allocation8 + $0x568] sm:$0xff]
    %v2183 = vld [vmem:[#allocation8 + $0x570] sm:$0xff]
    %v2184 = vld [vmem:[#allocation8 + $0x578] sm:$0xff]
    %v2185 = vld [vmem:[#allocation8 + $0x580] sm:$0xff]
    %v2186 = vld [vmem:[#allocation8 + $0x588] sm:$0xff]
    %v2187 = vld [vmem:[#allocation8 + $0x590] sm:$0xff]
    %v2188 = vld [vmem:[#allocation8 + $0x598] sm:$0xff]
    %v2189 = vld [vmem:[#allocation8 + $0x5a0] sm:$0xff]
    %v2190 = vld [vmem:[#allocation8 + $0x5a8] sm:$0xff]
    %v2191 = vld [vmem:[#allocation8 + $0x5b0] sm:$0xff]
    %v2192 = vld [vmem:[#allocation8 + $0x5b8] sm:$0xff]
    %v2193 = vld [vmem:[#allocation8 + $0x5c0] sm:$0xff]
    %v2194 = vld [vmem:[#allocation8 + $0x5c8] sm:$0xff]
    %v2195 = vld [vmem:[#allocation8 + $0x5d0] sm:$0xff]
    %v2196 = vld [vmem:[#allocation8 + $0x5d8] sm:$0xff]
    %v2197 = vld [vmem:[#allocation8 + $0x5e0] sm:$0xff]
    %v2198 = vld [vmem:[#allocation8 + $0x5e8] sm:$0xff]
    %v2199 = vld [vmem:[#allocation8 + $0x5f0] sm:$0xff]
    %v2200 = vld [vmem:[#allocation8 + $0x5f8] sm:$0xff]
    %v2201 = vld [vmem:[#allocation8 + $0x600] sm:$0xff]
    %v2202 = vld [vmem:[#allocation8 + $0x608] sm:$0xff]
    %v2203 = vld [vmem:[#allocation8 + $0x610] sm:$0xff]
    %v2204 = vld [vmem:[#allocation8 + $0x618] sm:$0xff]
    %v2205 = vld [vmem:[#allocation8 + $0x620] sm:$0xff]
    %v2206 = vld [vmem:[#allocation8 + $0x628] sm:$0xff]
    %v2207 = vld [vmem:[#allocation8 + $0x630] sm:$0xff]
    %v2208 = vld [vmem:[#allocation8 + $0x638] sm:$0xff]
    %v2209 = vld [vmem:[#allocation8 + $0x640] sm:$0xff]
    %v2210 = vld [vmem:[#allocation8 + $0x648] sm:$0xff]
    %v2211 = vld [vmem:[#allocation8 + $0x650] sm:$0xff]
    %v2212 = vld [vmem:[#allocation8 + $0x658] sm:$0xff]
    %v2213 = vld [vmem:[#allocation8 + $0x660] sm:$0xff]
    %v2214 = vld [vmem:[#allocation8 + $0x668] sm:$0xff]
    %v2215 = vld [vmem:[#allocation8 + $0x670] sm:$0xff]
    %v2216 = vld [vmem:[#allocation8 + $0x678] sm:$0xff]
    %v2217 = vld [vmem:[#allocation8 + $0x680] sm:$0xff]
    %v2218 = vld [vmem:[#allocation8 + $0x688] sm:$0xff]
    %v2219 = vld [vmem:[#allocation8 + $0x690] sm:$0xff]
    %v2220 = vld [vmem:[#allocation8 + $0x698] sm:$0xff]
    %v2221 = vld [vmem:[#allocation8 + $0x6a0] sm:$0xff]
    %v2222 = vld [vmem:[#allocation8 + $0x6a8] sm:$0xff]
    %v2223 = vld [vmem:[#allocation8 + $0x6b0] sm:$0xff]
    %v2224 = vld [vmem:[#allocation8 + $0x6b8] sm:$0xff]
    %v2225 = vld [vmem:[#allocation8 + $0x6c0] sm:$0xff]
    %v2226 = vld [vmem:[#allocation8 + $0x6c8] sm:$0xff]
    %v2227 = vld [vmem:[#allocation8 + $0x6d0] sm:$0xff]
    %v2228 = vld [vmem:[#allocation8 + $0x6d8] sm:$0xff]
    %v2229 = vld [vmem:[#allocation8 + $0x6e0] sm:$0xff]
    %v2230 = vld [vmem:[#allocation8 + $0x6e8] sm:$0xff]
    %v2231 = vld [vmem:[#allocation8 + $0x6f0] sm:$0xff]
    %v2232 = vld [vmem:[#allocation8 + $0x6f8] sm:$0xff]
    %v2233 = vld [vmem:[#allocation8 + $0x700] sm:$0xff]
    %v2234 = vld [vmem:[#allocation8 + $0x708] sm:$0xff]
    %v2235 = vld [vmem:[#allocation8 + $0x710] sm:$0xff]
    %v2236 = vld [vmem:[#allocation8 + $0x718] sm:$0xff]
    %v2237 = vld [vmem:[#allocation8 + $0x720] sm:$0xff]
    %v2238 = vld [vmem:[#allocation8 + $0x728] sm:$0xff]
    %v2239 = vld [vmem:[#allocation8 + $0x730] sm:$0xff]
    %v2240 = vld [vmem:[#allocation8 + $0x738] sm:$0xff]
    %v2241 = vld [vmem:[#allocation8 + $0x740] sm:$0xff]
    %v2242 = vld [vmem:[#allocation8 + $0x748] sm:$0xff]
    %v2243 = vld [vmem:[#allocation8 + $0x750] sm:$0xff]
    %v2244 = vld [vmem:[#allocation8 + $0x758] sm:$0xff]
    %v2245 = vld [vmem:[#allocation8 + $0x760] sm:$0xff]
    %v2246 = vld [vmem:[#allocation8 + $0x768] sm:$0xff]
    %v2247 = vld [vmem:[#allocation8 + $0x770] sm:$0xff]
    %v2248 = vld [vmem:[#allocation8 + $0x778] sm:$0xff]
    %v2249 = vld [vmem:[#allocation8 + $0x780] sm:$0xff]
    %v2250 = vld [vmem:[#allocation8 + $0x788] sm:$0xff]
    %v2251 = vld [vmem:[#allocation8 + $0x790] sm:$0xff]
    %v2252 = vld [vmem:[#allocation8 + $0x798] sm:$0xff]
    %v2253 = vld [vmem:[#allocation8 + $0x7a0] sm:$0xff]
    %v2254 = vld [vmem:[#allocation8 + $0x7a8] sm:$0xff]
    %v2255 = vld [vmem:[#allocation8 + $0x7b0] sm:$0xff]
    %v2256 = vld [vmem:[#allocation8 + $0x7b8] sm:$0xff]
    %v2257 = vld [vmem:[#allocation8 + $0x7c0] sm:$0xff]
    %v2258 = vld [vmem:[#allocation8 + $0x7c8] sm:$0xff]
    %v2259 = vld [vmem:[#allocation8 + $0x7d0] sm:$0xff]
    %v2260 = vld [vmem:[#allocation8 + $0x7d8] sm:$0xff]
    %v2261 = vld [vmem:[#allocation8 + $0x7e0] sm:$0xff]
    %v2262 = vld [vmem:[#allocation8 + $0x7e8] sm:$0xff]
    %v2263 = vld [vmem:[#allocation8 + $0x7f0] sm:$0xff]
    %v2264 = vld [vmem:[#allocation8 + $0x7f8] sm:$0xff]
    %v2265 = vld [vmem:[#allocation10] sm:$0xf]
    %v2267 = vperm.slane %v2265, 0
    %v2268 = vperm.slane %v2265, 1
    %v2269 = vperm.slane %v2265, 2
    %v2270 = vperm.slane %v2265, 3
    %2275 = vmatpush.msra.mxu0 %v2069
    %2276 = vmatpush.msra.mxu0 %v2065
    %2277 = vmatpush.msra.mxu0 %v2061
    %2278 = vmatpush.msra.mxu0 %v2057
    %2279 = vmatpush.msra.mxu0 %v2053
    %2280 = vmatpush.msra.mxu0 %v2049
    %2281 = vmatpush.msra.mxu0 %v2045
    %2282 = vmatpush.msra.mxu0 %v2041
    %2283 = vmatpush.msra.mxu0 %v2037
    %2284 = vmatpush.msra.mxu0 %v2033
    %2285 = vmatpush.msra.mxu0 %v2029
    %2286 = vmatpush.msra.mxu0 %v2025
    %2287 = vmatpush.msra.mxu0 %v2021
    %2288 = vmatpush.msra.mxu0 %v2017
    %2289 = vmatpush.msra.mxu0 %v2013
    %2290 = vmatpush.msra.mxu0 %v2009
    %2291 = vmatmul.f32.gmra.mxu0 %v2001
    %v2292 = vpop.f32.mrf.mxu0
    %v2293 = vadd.f32 %v2267, %v2292
    %2294 = vmatmul.f32.gmra.mxu0 %v2005
    %v2295 = vpop.f32.mrf.mxu0
    %v2296 = vadd.f32 %v2267, %v2295
    %2297 = vdwg.mxu0
    %2298 = vmatpush.msra.mxu0 %v2133
    %2299 = vmatpush.msra.mxu0 %v2129
    %2300 = vmatpush.msra.mxu0 %v2125
    %2301 = vmatpush.msra.mxu0 %v2121
    %2302 = vmatpush.msra.mxu0 %v2117
    %2303 = vmatpush.msra.mxu0 %v2113
    %2304 = vmatpush.msra.mxu0 %v2109
    %2305 = vmatpush.msra.mxu0 %v2105
    %2306 = vmatpush.msra.mxu0 %v2101
    %2307 = vmatpush.msra.mxu0 %v2097
    %2308 = vmatpush.msra.mxu0 %v2093
    %2309 = vmatpush.msra.mxu0 %v2089
    %2310 = vmatpush.msra.mxu0 %v2085
    %2311 = vmatpush.msra.mxu0 %v2081
    %2312 = vmatpush.msra.mxu0 %v2077
    %2313 = vmatpush.msra.mxu0 %v2073
    %2314 = vmatmul.f32.gmra.mxu0 %v2002
    %v2315 = vpop.f32.mrf.mxu0
    %v2316 = vadd.f32 %v2293, %v2315
    %2317 = vmatmul.f32.gmra.mxu0 %v2006
    %v2318 = vpop.f32.mrf.mxu0
    %v2319 = vadd.f32 %v2296, %v2318
    %2320 = vdwg.mxu0
    %2321 = vmatpush.msra.mxu0 %v2197
    %2322 = vmatpush.msra.mxu0 %v2193
    %2323 = vmatpush.msra.mxu0 %v2189
    %2324 = vmatpush.msra.mxu0 %v2185
    %2325 = vmatpush.msra.mxu0 %v2181
    %2326 = vmatpush.msra.mxu0 %v2177
    %2327 = vmatpush.msra.mxu0 %v2173
    %2328 = vmatpush.msra.mxu0 %v2169
    %2329 = vmatpush.msra.mxu0 %v2165
    %2330 = vmatpush.msra.mxu0 %v2161
    %2331 = vmatpush.msra.mxu0 %v2157
    %2332 = vmatpush.msra.mxu0 %v2153
    %2333 = vmatpush.msra.mxu0 %v2149
    %2334 = vmatpush.msra.mxu0 %v2145
    %2335 = vmatpush.msra.mxu0 %v2141
    %2336 = vmatpush.msra.mxu0 %v2137
    %2337 = vmatmul.f32.gmra.mxu0 %v2003
    %v2338 = vpop.f32.mrf.mxu0
    %v2339 = vadd.f32 %v2316, %v2338
    %2340 = vmatmul.f32.gmra.mxu0 %v2007
    %v2341 = vpop.f32.mrf.mxu0
    %v2342 = vadd.f32 %v2319, %v2341
    %2343 = vdwg.mxu0
    %2344 = vmatpush.msra.mxu0 %v2261
    %2345 = vmatpush.msra.mxu0 %v2257
    %2346 = vmatpush.msra.mxu0 %v2253
    %2347 = vmatpush.msra.mxu0 %v2249
    %2348 = vmatpush.msra.mxu0 %v2245
    %2349 = vmatpush.msra.mxu0 %v2241
    %2350 = vmatpush.msra.mxu0 %v2237
    %2351 = vmatpush.msra.mxu0 %v2233
    %2352 = vmatpush.msra.mxu0 %v2229
    %2353 = vmatpush.msra.mxu0 %v2225
    %2354 = vmatpush.msra.mxu0 %v2221
    %2355 = vmatpush.msra.mxu0 %v2217
    %2356 = vmatpush.msra.mxu0 %v2213
    %2357 = vmatpush.msra.mxu0 %v2209
    %2358 = vmatpush.msra.mxu0 %v2205
    %2359 = vmatpush.msra.mxu0 %v2201
    %2360 = vmatmul.f32.gmra.mxu0 %v2004
    %v2361 = vpop.f32.mrf.mxu0
    %v2362 = vadd.f32 %v2339, %v2361
    %2363 = vmatmul.f32.gmra.mxu0 %v2008
    %v2364 = vpop.f32.mrf.mxu0
    %v2365 = vadd.f32 %v2342, %v2364
    %2366 = vdwg.mxu0
    %2367 = vmatpush.msra.mxu0 %v2070
    %2368 = vmatpush.msra.mxu0 %v2066
    %2369 = vmatpush.msra.mxu0 %v2062
    %2370 = vmatpush.msra.mxu0 %v2058
    %2371 = vmatpush.msra.mxu0 %v2054
    %2372 = vmatpush.msra.mxu0 %v2050
    %2373 = vmatpush.msra.mxu0 %v2046
    %2374 = vmatpush.msra.mxu0 %v2042
    %2375 = vmatpush.msra.mxu0 %v2038
    %2376 = vmatpush.msra.mxu0 %v2034
    %2377 = vmatpush.msra.mxu0 %v2030
    %2378 = vmatpush.msra.mxu0 %v2026
    %2379 = vmatpush.msra.mxu0 %v2022
    %2380 = vmatpush.msra.mxu0 %v2018
    %2381 = vmatpush.msra.mxu0 %v2014
    %2382 = vmatpush.msra.mxu0 %v2010
    %2383 = vmatmul.f32.gmra.mxu0 %v2001
    %v2384 = vpop.f32.mrf.mxu0
    %v2385 = vadd.f32 %v2268, %v2384
    %2386 = vmatmul.f32.gmra.mxu0 %v2005
    %v2387 = vpop.f32.mrf.mxu0
    %v2388 = vadd.f32 %v2268, %v2387
    %2389 = vdwg.mxu0
    %2390 = vmatpush.msra.mxu0 %v2134
    %2391 = vmatpush.msra.mxu0 %v2130
    %2392 = vmatpush.msra.mxu0 %v2126
    %2393 = vmatpush.msra.mxu0 %v2122
    %2394 = vmatpush.msra.mxu0 %v2118
    %2395 = vmatpush.msra.mxu0 %v2114
    %2396 = vmatpush.msra.mxu0 %v2110
    %2397 = vmatpush.msra.mxu0 %v2106
    %2398 = vmatpush.msra.mxu0 %v2102
    %2399 = vmatpush.msra.mxu0 %v2098
    %2400 = vmatpush.msra.mxu0 %v2094
    %2401 = vmatpush.msra.mxu0 %v2090
    %2402 = vmatpush.msra.mxu0 %v2086
    %2403 = vmatpush.msra.mxu0 %v2082
    %2404 = vmatpush.msra.mxu0 %v2078
    %2405 = vmatpush.msra.mxu0 %v2074
    %2406 = vmatmul.f32.gmra.mxu0 %v2002
    %v2407 = vpop.f32.mrf.mxu0
    %v2408 = vadd.f32 %v2385, %v2407
    %2409 = vmatmul.f32.gmra.mxu0 %v2006
    %v2410 = vpop.f32.mrf.mxu0
    %v2411 = vadd.f32 %v2388, %v2410
    %2412 = vdwg.mxu0
    %2413 = vmatpush.msra.mxu0 %v2198
    %2414 = vmatpush.msra.mxu0 %v2194
    %2415 = vmatpush.msra.mxu0 %v2190
    %2416 = vmatpush.msra.mxu0 %v2186
    %2417 = vmatpush.msra.mxu0 %v2182
    %2418 = vmatpush.msra.mxu0 %v2178
    %2419 = vmatpush.msra.mxu0 %v2174
    %2420 = vmatpush.msra.mxu0 %v2170
    %2421 = vmatpush.msra.mxu0 %v2166
    %2422 = vmatpush.msra.mxu0 %v2162
    %2423 = vmatpush.msra.mxu0 %v2158
    %2424 = vmatpush.msra.mxu0 %v2154
    %2425 = vmatpush.msra.mxu0 %v2150
    %2426 = vmatpush.msra.mxu0 %v2146
    %2427 = vmatpush.msra.mxu0 %v2142
    %2428 = vmatpush.msra.mxu0 %v2138
    %2429 = vmatmul.f32.gmra.mxu0 %v2003
    %v2430 = vpop.f32.mrf.mxu0
    %v2431 = vadd.f32 %v2408, %v2430
    %2432 = vmatmul.f32.gmra.mxu0 %v2007
    %v2433 = vpop.f32.mrf.mxu0
    %v2434 = vadd.f32 %v2411, %v2433
    %2435 = vdwg.mxu0
    %2436 = vmatpush.msra.mxu0 %v2262
    %2437 = vmatpush.msra.mxu0 %v2258
    %2438 = vmatpush.msra.mxu0 %v2254
    %2439 = vmatpush.msra.mxu0 %v2250
    %2440 = vmatpush.msra.mxu0 %v2246
    %2441 = vmatpush.msra.mxu0 %v2242
    %2442 = vmatpush.msra.mxu0 %v2238
    %2443 = vmatpush.msra.mxu0 %v2234
    %2444 = vmatpush.msra.mxu0 %v2230
    %2445 = vmatpush.msra.mxu0 %v2226
    %2446 = vmatpush.msra.mxu0 %v2222
    %2447 = vmatpush.msra.mxu0 %v2218
    %2448 = vmatpush.msra.mxu0 %v2214
    %2449 = vmatpush.msra.mxu0 %v2210
    %2450 = vmatpush.msra.mxu0 %v2206
    %2451 = vmatpush.msra.mxu0 %v2202
    %2452 = vmatmul.f32.gmra.mxu0 %v2004
    %v2453 = vpop.f32.mrf.mxu0
    %v2454 = vadd.f32 %v2431, %v2453
    %2455 = vmatmul.f32.gmra.mxu0 %v2008
    %v2456 = vpop.f32.mrf.mxu0
    %v2457 = vadd.f32 %v2434, %v2456
    %2458 = vdwg.mxu0
    %2459 = vmatpush.msra.mxu0 %v2071
    %2460 = vmatpush.msra.mxu0 %v2067
    %2461 = vmatpush.msra.mxu0 %v2063
    %2462 = vmatpush.msra.mxu0 %v2059
    %2463 = vmatpush.msra.mxu0 %v2055
    %2464 = vmatpush.msra.mxu0 %v2051
    %2465 = vmatpush.msra.mxu0 %v2047
    %2466 = vmatpush.msra.mxu0 %v2043
    %2467 = vmatpush.msra.mxu0 %v2039
    %2468 = vmatpush.msra.mxu0 %v2035
    %2469 = vmatpush.msra.mxu0 %v2031
    %2470 = vmatpush.msra.mxu0 %v2027
    %2471 = vmatpush.msra.mxu0 %v2023
    %2472 = vmatpush.msra.mxu0 %v2019
    %2473 = vmatpush.msra.mxu0 %v2015
    %2474 = vmatpush.msra.mxu0 %v2011
    %2475 = vmatmul.f32.gmra.mxu0 %v2001
    %v2476 = vpop.f32.mrf.mxu0
    %v2477 = vadd.f32 %v2269, %v2476
    %2478 = vmatmul.f32.gmra.mxu0 %v2005
    %v2479 = vpop.f32.mrf.mxu0
    %v2480 = vadd.f32 %v2269, %v2479
    %2481 = vdwg.mxu0
    %2482 = vmatpush.msra.mxu0 %v2135
    %2483 = vmatpush.msra.mxu0 %v2131
    %2484 = vmatpush.msra.mxu0 %v2127
    %2485 = vmatpush.msra.mxu0 %v2123
    %2486 = vmatpush.msra.mxu0 %v2119
    %2487 = vmatpush.msra.mxu0 %v2115
    %2488 = vmatpush.msra.mxu0 %v2111
    %2489 = vmatpush.msra.mxu0 %v2107
    %2490 = vmatpush.msra.mxu0 %v2103
    %2491 = vmatpush.msra.mxu0 %v2099
    %2492 = vmatpush.msra.mxu0 %v2095
    %2493 = vmatpush.msra.mxu0 %v2091
    %2494 = vmatpush.msra.mxu0 %v2087
    %2495 = vmatpush.msra.mxu0 %v2083
    %2496 = vmatpush.msra.mxu0 %v2079
    %2497 = vmatpush.msra.mxu0 %v2075
    %2498 = vmatmul.f32.gmra.mxu0 %v2002
    %v2499 = vpop.f32.mrf.mxu0
    %v2500 = vadd.f32 %v2477, %v2499
    %2501 = vmatmul.f32.gmra.mxu0 %v2006
    %v2502 = vpop.f32.mrf.mxu0
    %v2503 = vadd.f32 %v2480, %v2502
    %2504 = vdwg.mxu0
    %2505 = vmatpush.msra.mxu0 %v2199
    %2506 = vmatpush.msra.mxu0 %v2195
    %2507 = vmatpush.msra.mxu0 %v2191
    %2508 = vmatpush.msra.mxu0 %v2187
    %2509 = vmatpush.msra.mxu0 %v2183
    %2510 = vmatpush.msra.mxu0 %v2179
    %2511 = vmatpush.msra.mxu0 %v2175
    %2512 = vmatpush.msra.mxu0 %v2171
    %2513 = vmatpush.msra.mxu0 %v2167
    %2514 = vmatpush.msra.mxu0 %v2163
    %2515 = vmatpush.msra.mxu0 %v2159
    %2516 = vmatpush.msra.mxu0 %v2155
    %2517 = vmatpush.msra.mxu0 %v2151
    %2518 = vmatpush.msra.mxu0 %v2147
    %2519 = vmatpush.msra.mxu0 %v2143
    %2520 = vmatpush.msra.mxu0 %v2139
    %2521 = vmatmul.f32.gmra.mxu0 %v2003
    %v2522 = vpop.f32.mrf.mxu0
    %v2523 = vadd.f32 %v2500, %v2522
    %2524 = vmatmul.f32.gmra.mxu0 %v2007
    %v2525 = vpop.f32.mrf.mxu0
    %v2526 = vadd.f32 %v2503, %v2525
    %2527 = vdwg.mxu0
    %2528 = vmatpush.msra.mxu0 %v2263
    %2529 = vmatpush.msra.mxu0 %v2259
    %2530 = vmatpush.msra.mxu0 %v2255
    %2531 = vmatpush.msra.mxu0 %v2251
    %2532 = vmatpush.msra.mxu0 %v2247
    %2533 = vmatpush.msra.mxu0 %v2243
    %2534 = vmatpush.msra.mxu0 %v2239
    %2535 = vmatpush.msra.mxu0 %v2235
    %2536 = vmatpush.msra.mxu0 %v2231
    %2537 = vmatpush.msra.mxu0 %v2227
    %2538 = vmatpush.msra.mxu0 %v2223
    %2539 = vmatpush.msra.mxu0 %v2219
    %2540 = vmatpush.msra.mxu0 %v2215
    %2541 = vmatpush.msra.mxu0 %v2211
    %2542 = vmatpush.msra.mxu0 %v2207
    %2543 = vmatpush.msra.mxu0 %v2203
    %2544 = vmatmul.f32.gmra.mxu0 %v2004
    %v2545 = vpop.f32.mrf.mxu0
    %v2546 = vadd.f32 %v2523, %v2545
    %2547 = vmatmul.f32.gmra.mxu0 %v2008
    %v2548 = vpop.f32.mrf.mxu0
    %v2549 = vadd.f32 %v2526, %v2548
    %2550 = vdwg.mxu0
    %2551 = vmatpush.msra.mxu0 %v2072
    %2552 = vmatpush.msra.mxu0 %v2068
    %2553 = vmatpush.msra.mxu0 %v2064
    %2554 = vmatpush.msra.mxu0 %v2060
    %2555 = vmatpush.msra.mxu0 %v2056
    %2556 = vmatpush.msra.mxu0 %v2052
    %2557 = vmatpush.msra.mxu0 %v2048
    %2558 = vmatpush.msra.mxu0 %v2044
    %2559 = vmatpush.msra.mxu0 %v2040
    %2560 = vmatpush.msra.mxu0 %v2036
    %2561 = vmatpush.msra.mxu0 %v2032
    %2562 = vmatpush.msra.mxu0 %v2028
    %2563 = vmatpush.msra.mxu0 %v2024
    %2564 = vmatpush.msra.mxu0 %v2020
    %2565 = vmatpush.msra.mxu0 %v2016
    %2566 = vmatpush.msra.mxu0 %v2012
    %2567 = vmatmul.f32.gmra.mxu0 %v2001
    %v2568 = vpop.f32.mrf.mxu0
    %v2569 = vadd.f32 %v2270, %v2568
    %2570 = vmatmul.f32.gmra.mxu0 %v2005
    %v2571 = vpop.f32.mrf.mxu0
    %v2572 = vadd.f32 %v2270, %v2571
    %2573 = vdwg.mxu0
    %2574 = vmatpush.msra.mxu0 %v2136
    %2575 = vmatpush.msra.mxu0 %v2132
    %2576 = vmatpush.msra.mxu0 %v2128
    %2577 = vmatpush.msra.mxu0 %v2124
    %2578 = vmatpush.msra.mxu0 %v2120
    %2579 = vmatpush.msra.mxu0 %v2116
    %2580 = vmatpush.msra.mxu0 %v2112
    %2581 = vmatpush.msra.mxu0 %v2108
    %2582 = vmatpush.msra.mxu0 %v2104
    %2583 = vmatpush.msra.mxu0 %v2100
    %2584 = vmatpush.msra.mxu0 %v2096
    %2585 = vmatpush.msra.mxu0 %v2092
    %2586 = vmatpush.msra.mxu0 %v2088
    %2587 = vmatpush.msra.mxu0 %v2084
    %2588 = vmatpush.msra.mxu0 %v2080
    %2589 = vmatpush.msra.mxu0 %v2076
    %2590 = vmatmul.f32.gmra.mxu0 %v2002
    %v2591 = vpop.f32.mrf.mxu0
    %v2592 = vadd.f32 %v2569, %v2591
    %2593 = vmatmul.f32.gmra.mxu0 %v2006
    %v2594 = vpop.f32.mrf.mxu0
    %v2595 = vadd.f32 %v2572, %v2594
    %2596 = vdwg.mxu0
    %2597 = vmatpush.msra.mxu0 %v2200
    %2598 = vmatpush.msra.mxu0 %v2196
    %2599 = vmatpush.msra.mxu0 %v2192
    %2600 = vmatpush.msra.mxu0 %v2188
    %2601 = vmatpush.msra.mxu0 %v2184
    %2602 = vmatpush.msra.mxu0 %v2180
    %2603 = vmatpush.msra.mxu0 %v2176
    %2604 = vmatpush.msra.mxu0 %v2172
    %2605 = vmatpush.msra.mxu0 %v2168
    %2606 = vmatpush.msra.mxu0 %v2164
    %2607 = vmatpush.msra.mxu0 %v2160
    %2608 = vmatpush.msra.mxu0 %v2156
    %2609 = vmatpush.msra.mxu0 %v2152
    %2610 = vmatpush.msra.mxu0 %v2148
    %2611 = vmatpush.msra.mxu0 %v2144
    %2612 = vmatpush.msra.mxu0 %v2140
    %2613 = vmatmul.f32.gmra.mxu0 %v2003
    %v2614 = vpop.f32.mrf.mxu0
    %v2615 = vadd.f32 %v2592, %v2614
    %2616 = vmatmul.f32.gmra.mxu0 %v2007
    %v2617 = vpop.f32.mrf.mxu0
    %v2618 = vadd.f32 %v2595, %v2617
    %2619 = vdwg.mxu0
    %2620 = vmatpush.msra.mxu0 %v2264
    %2621 = vmatpush.msra.mxu0 %v2260
    %2622 = vmatpush.msra.mxu0 %v2256
    %2623 = vmatpush.msra.mxu0 %v2252
    %2624 = vmatpush.msra.mxu0 %v2248
    %2625 = vmatpush.msra.mxu0 %v2244
    %2626 = vmatpush.msra.mxu0 %v2240
    %2627 = vmatpush.msra.mxu0 %v2236
    %2628 = vmatpush.msra.mxu0 %v2232
    %2629 = vmatpush.msra.mxu0 %v2228
    %2630 = vmatpush.msra.mxu0 %v2224
    %2631 = vmatpush.msra.mxu0 %v2220
    %2632 = vmatpush.msra.mxu0 %v2216
    %2633 = vmatpush.msra.mxu0 %v2212
    %2634 = vmatpush.msra.mxu0 %v2208
    %2635 = vmatpush.msra.mxu0 %v2204
    %2636 = vmatmul.f32.gmra.mxu0 %v2004
    %v2637 = vpop.f32.mrf.mxu0
    %v2638 = vadd.f32 %v2615, %v2637
    %2639 = vmatmul.f32.gmra.mxu0 %v2008
    %v2640 = vpop.f32.mrf.mxu0
    %v2641 = vadd.f32 %v2618, %v2640
    %2642 = vdwg.mxu0
    %2643 = vst [vmem:[#allocation11] sm:$0xff] %v2362
    %2644 = vst [vmem:[#allocation11 + $0x8] sm:$0xff] %v2454
    %2645 = vst [vmem:[#allocation11 + $0x10] sm:$0xff] %v2546
    %2646 = vst [vmem:[#allocation11 + $0x18] sm:$0xff] %v2638
    %2647 = vst [vmem:[#allocation11 + $0x20] sm:$0xff] %v2365
    %2648 = vst [vmem:[#allocation11 + $0x28] sm:$0xff] %v2457
    %2649 = vst [vmem:[#allocation11 + $0x30] sm:$0xff] %v2549
    %2650 = vst [vmem:[#allocation11 + $0x38] sm:$0xff] %v2641
    // Predicated region
    $region42: #{tpu_custom_call.1} parent=1 // pred_check
      _
    $region43: #{tpu_custom_call.1} parent=1 // pred_check_branch
      %2652 = sbr.rel (0) target = $region45
    $region44: #{tpu_custom_call.1} parent=1 // pred_region
      %2654 = vsyncadd [#allocation4], 0
      %s2655 = sshll.u32 [#allocation11], 4
      %s2656 = int_to_ptr.vmem [resolvable:$true] %s2655
      %s2657 = sshll.u32 %s5, 4
      %s2658 = int_to_ptr.hbm [resolvable:$true] %s2657
      %2663 = dma.vmem_to_hbm [thread:$0]  %s2656, 1024, %s2658, [#allocation4], 512, 512, 32
    $region45: #{tpu_custom_call.1} parent=1 // pred_fallthru
      _
    // Predicated region
    $region46: #{tpu_custom_call.1} parent=1 // pred_check
      _
    $region47: #{tpu_custom_call.1} parent=1 // pred_check_branch
      %2665 = sbr.rel (0) target = $region49
    $region48: #{tpu_custom_call.1} parent=1 // pred_region
      %2667 = dma.done [#allocation4], 1024
    $region49: #{tpu_custom_call.1} parent=1 // pred_fallthru
      _
    %2668 = vsyncpa [#allocation3], 1
    %2669 = vsyncpa [#allocation6], 1
    %2670 = vsyncpa [#allocation9], 1
    %2671 = vsyncpa [#allocation4], 1

</llo_original>
